<compile_context>
chip_gen: v7x
topology: tpu7x:2x2x1
jax: 0.10.0
libtpu: 0.0.40
codegen_flags: <defaults>
</compile_context>

<pallas_src>
import jax
import jax.numpy as jnp
from jax import lax
from jax.experimental import pallas as pl
from jax.experimental.pallas import tpu as pltpu


def _sae_fused_kernel(x_ref, w_ref, b1_ref, b2_ref, xhat_ref, feat_ref, acc_ref):
    """One (tm, tn_h) hidden tile: encoder tile + decoder partial accumulation."""
    j = pl.program_id(1)  # hidden-tile index (reduction axis for x_hat)

    @pl.when(j == 0)
    def _init():
        acc_ref[...] = jnp.zeros_like(acc_ref)

    w = w_ref[...]                                       # (d_in, tn_h)

    # Encoder: features tile = relu(x @ W_tile + b1_tile), f32 accumulation.
    feat = jnp.dot(x_ref[...], w, preferred_element_type=jnp.float32)
    feat = jnp.maximum(feat + b1_ref[...], 0.0)          # (tm, tn_h) f32
    feat_ref[...] = feat.astype(feat_ref.dtype)

    # Decoder partial: x_hat += feat_tile @ W_tile.T (contract over hidden).
    # Contracting dims (1, 1) lets the MXU handle the transposed RHS; no
    # W_d.T is ever materialized in HBM.
    acc_ref[...] += lax.dot_general(
        feat.astype(w.dtype), w,
        dimension_numbers=(((1,), (1,)), ((), ())),
        preferred_element_type=jnp.float32,
    )

    @pl.when(j == pl.num_programs(1) - 1)
    def _finalize():
        xhat_ref[...] = (acc_ref[...] + b2_ref[...]).astype(xhat_ref.dtype)


def _pick_hidden_tile(H, d_in, w_itemsize):
    """Largest 128-multiple divisor of H whose double-buffered W tile fits ~16 MiB."""
    budget = 16 * 1024 * 1024
    cap = max(128, budget // (2 * d_in * w_itemsize))
    cap = min(cap, H)
    t = (cap // 128) * 128
    while t >= 128:
        if H % t == 0:
            return t
        t -= 128
    return H  # H < 128 or no aligned divisor: use the full hidden dim.


def _pick_batch_tile(M):
    # Keep M as a single block unless it is large and cleanly splittable
    # (>=2 parallel row-blocks then feed both TensorCores on v7x).
    if M <= 256 or M % 256 != 0:
        return M
    return 256


def sae_forward(x, W_d, b1, b2, *, compute_dtype=None):
    """Fused SAE forward. Returns (x_hat, features) like the PyTorch module.

    x:   (B, d_in)
    W_d: (d_in, d_hidden)  -- fc2 weight (PyTorch layout); fc1 weight is W_d.T
    compute_dtype: optional matmul-input dtype (e.g. jnp.bfloat16) to halve
                   HBM weight traffic; accumulation stays f32.
    """
    M, d_in = x.shape
    d_in2, H = W_d.shape
    assert d_in == d_in2 and b1.shape == (H,) and b2.shape == (d_in,)
    out_dtype = x.dtype

    if compute_dtype is not None:
        x = x.astype(compute_dtype)
        W_d = W_d.astype(compute_dtype)

    b1_2d = b1.reshape(1, H).astype(jnp.float32)
    b2_2d = b2.reshape(1, d_in).astype(jnp.float32)

    tm = _pick_batch_tile(M)
    tn_h = _pick_hidden_tile(H, d_in, W_d.dtype.itemsize)
    m_blocks = M // tm
    h_blocks = H // tn_h

    out_isz = jnp.dtype(out_dtype).itemsize
    vmem_need = (
        2 * (tm * d_in * x.dtype.itemsize        # x tile (double-buffered)
             + d_in * tn_h * W_d.dtype.itemsize  # W tile
             + tn_h * 4 + d_in * 4               # bias tiles
             + tm * tn_h * out_isz               # features tile
             + tm * d_in * out_isz)              # x_hat tile
        + tm * d_in * 4                          # f32 accumulator scratch
    )
    vmem_limit = int(min(max(vmem_need + (4 << 20), 16 << 20), 100 << 20))

    bytes_accessed = (
        x.size * x.dtype.itemsize + W_d.size * W_d.dtype.itemsize
        + b1_2d.size * 4 + b2_2d.size * 4
        + M * H * out_isz + M * d_in * out_isz
    )

    x_hat, features = pl.pallas_call(
        _sae_fused_kernel,
        out_shape=(
            jax.ShapeDtypeStruct((M, d_in), out_dtype),   # x_hat
            jax.ShapeDtypeStruct((M, H), out_dtype),      # features
        ),
        grid_spec=pltpu.PrefetchScalarGridSpec(
            num_scalar_prefetch=0,
            grid=(m_blocks, h_blocks),
            in_specs=[
                pl.BlockSpec((tm, d_in), lambda i, j: (i, 0)),    # x (resident)
                pl.BlockSpec((d_in, tn_h), lambda i, j: (0, j)),  # W_d slice
                pl.BlockSpec((1, tn_h), lambda i, j: (0, j)),     # b1 slice
                pl.BlockSpec((1, d_in), lambda i, j: (0, 0)),     # b2 (resident)
            ],
            out_specs=[
                pl.BlockSpec((tm, d_in), lambda i, j: (i, 0)),    # x_hat (resident)
                pl.BlockSpec((tm, tn_h), lambda i, j: (i, j)),    # features
            ],
            scratch_shapes=[pltpu.VMEM((tm, d_in), jnp.float32)],
        ),
        compiler_params=pltpu.CompilerParams(
            dimension_semantics=("parallel", "arbitrary"),
            vmem_limit_bytes=vmem_limit,
        ),
        cost_estimate=pl.CostEstimate(
            flops=4 * M * d_in * H,   # two matmuls, 2*M*d_in*H each
            transcendentals=0,
            bytes_accessed=bytes_accessed,
        ),
    )(x, W_d, b1_2d, b2_2d)
    return x_hat, features


def init_sae_params(key, d_in, d_hidden, dtype=jnp.float32):
    """Mirrors SAE.initialize_weights(): W_d ~ randn, row-normalized * 0.1, zero biases."""
    W_d = jax.random.normal(key, (d_in, d_hidden), dtype=jnp.float32)
    W_d = W_d / jnp.linalg.norm(W_d, axis=1, keepdims=True) * 0.1
    b1 = jnp.zeros((d_hidden,), dtype)
    b2 = jnp.zeros((d_in,), dtype)
    return W_d.astype(dtype), b1, b2


if __name__ == "__main__":
    # Small shapes consistent with the module (real module: d_in=4096, hidden=8*d_in).
    B, D_IN = 8, 256
    D_HIDDEN = 8 * D_IN  # 2048

    key = jax.random.PRNGKey(0)
    k_w, k_x = jax.random.split(key)

    W_d, b1, b2 = init_sae_params(k_w, D_IN, D_HIDDEN)
    x = jax.random.normal(k_x, (B, D_IN), dtype=jnp.float32)

    # f32 path (exact semantics of the PyTorch module).
    x_hat, features = sae_forward(x, W_d, b1, b2)
    jax.block_until_ready((x_hat, features))

    feat_ref = jnp.maximum(x @ W_d + b1, 0.0)
    x_hat_ref = feat_ref @ W_d.T + b2
    assert features.shape == (B, D_HIDDEN) and x_hat.shape == (B, D_IN)
    assert jnp.allclose(features, feat_ref, atol=1e-4, rtol=1e-4)
    assert jnp.allclose(x_hat, x_hat_ref, atol=1e-4, rtol=1e-4)

    # bf16-weight path (halves HBM weight traffic; f32 accumulation on the MXU).
    x_hat_bf, feat_bf = sae_forward(x, W_d, b1, b2, compute_dtype=jnp.bfloat16)
    jax.block_until_ready((x_hat_bf, feat_bf))
    assert jnp.allclose(feat_bf, feat_ref, atol=5e-3, rtol=5e-2)
    assert jnp.allclose(x_hat_bf, x_hat_ref, atol=5e-3, rtol=5e-2)

    print("KERNEL_OK")
</pallas_src>

<mosaic_0001>
module attributes {stable_mosaic.version = 11 : i64} {
  func.func @_sae_fused_kernel(%arg0: i32, %arg1: i32, %arg2: memref<8x256xf32, #tpu.memory_space<vmem>>, %arg3: memref<256x2048xf32, #tpu.memory_space<vmem>>, %arg4: memref<1x2048xf32, #tpu.memory_space<vmem>>, %arg5: memref<1x256xf32, #tpu.memory_space<vmem>>, %arg6: memref<8x256xf32, #tpu.memory_space<vmem>>, %arg7: memref<8x2048xf32, #tpu.memory_space<vmem>>, %arg8: memref<8x256xf32, #tpu.memory_space<vmem>>) attributes {dimension_semantics = [#tpu.dimension_semantics<parallel>, #tpu.dimension_semantics<arbitrary>], iteration_bounds = array<i64: 1, 1>, scalar_prefetch = 0 : i64, scratch_operands = 1 : i64, tpu.core_type = #tpu.core_type<tc>, window_params = [{transform_indices = @transform_0, window_bounds = array<i64: 8, 256>}, {transform_indices = @transform_1, window_bounds = array<i64: 256, 2048>}, {transform_indices = @transform_2, window_bounds = array<i64: 1, 2048>}, {pipeline_mode = #tpu.pipeline_mode<synchronous>, transform_indices = @transform_3, window_bounds = array<i64: 1, 256>}, {transform_indices = @transform_4, window_bounds = array<i64: 8, 256>}, {transform_indices = @transform_5, window_bounds = array<i64: 8, 2048>}]} {
    %c0_i32 = arith.constant 0 : i32
    %0 = arith.cmpi eq, %arg1, %c0_i32 : i32
    %1 = arith.extui %0 : i1 to i32
    %c0_i32_0 = arith.constant 0 : i32
    %2 = arith.cmpi ne, %1, %c0_i32_0 : i32
    scf.if %2 {
      %cst_16 = arith.constant 0.000000e+00 : f32
      %19 = vector.broadcast %cst_16 : f32 to vector<8x256xf32>
      %c0_17 = arith.constant 0 : index
      %c0_18 = arith.constant 0 : index
      %20 = vector.load %arg8[%c0_17, %c0_18] : memref<8x256xf32, #tpu.memory_space<vmem>>, vector<8x256xf32>
      tpu.vector_store %arg8[%c0_17, %c0_18], %19 {strides = array<i32>} : memref<8x256xf32, #tpu.memory_space<vmem>>, vector<8x256xf32>,
    } else {
    }
    %c0 = arith.constant 0 : index
    %c0_1 = arith.constant 0 : index
    %3 = vector.load %arg3[%c0, %c0_1] : memref<256x2048xf32, #tpu.memory_space<vmem>>, vector<256x2048xf32>
    %c0_2 = arith.constant 0 : index
    %c0_3 = arith.constant 0 : index
    %4 = vector.load %arg2[%c0_2, %c0_3] : memref<8x256xf32, #tpu.memory_space<vmem>>, vector<8x256xf32>
    %cst = arith.constant dense<0.000000e+00> : vector<8x2048xf32>
    %5 = tpu.matmul %4, %3, %cst {dimension_numbers = #tpu.dot_dimension_numbers<[1], [0], [0], [1], [0, 0, 1, 1], [], []>} : vector<8x256xf32>, vector<256x2048xf32>, vector<8x2048xf32> -> vector<8x2048xf32>
    %c0_4 = arith.constant 0 : index
    %c0_5 = arith.constant 0 : index
    %6 = vector.load %arg4[%c0_4, %c0_5] : memref<1x2048xf32, #tpu.memory_space<vmem>>, vector<1x2048xf32>
    %7 = vector.broadcast %6 : vector<1x2048xf32> to vector<8x2048xf32>
    %8 = arith.addf %5, %7 : vector<8x2048xf32>
    %cst_6 = arith.constant 0.000000e+00 : f32
    %9 = vector.broadcast %cst_6 : f32 to vector<8x2048xf32>
    %10 = arith.maximumf %8, %9 : vector<8x2048xf32>
    %c0_7 = arith.constant 0 : index
    %c0_8 = arith.constant 0 : index
    %11 = vector.load %arg7[%c0_7, %c0_8] : memref<8x2048xf32, #tpu.memory_space<vmem>>, vector<8x2048xf32>
    tpu.vector_store %arg7[%c0_7, %c0_8], %10 {strides = array<i32>} : memref<8x2048xf32, #tpu.memory_space<vmem>>, vector<8x2048xf32>,
    %c0_9 = arith.constant 0 : index
    %c0_10 = arith.constant 0 : index
    %12 = vector.load %arg8[%c0_9, %c0_10] : memref<8x256xf32, #tpu.memory_space<vmem>>, vector<8x256xf32>
    %cst_11 = arith.constant dense<0.000000e+00> : vector<8x256xf32>
    %13 = tpu.matmul %10, %3, %cst_11 {dimension_numbers = #tpu.dot_dimension_numbers<[1], [1], [0], [0], [0, 0, 1, 0], [], []>} : vector<8x2048xf32>, vector<256x2048xf32>, vector<8x256xf32> -> vector<8x256xf32>
    %14 = arith.addf %12, %13 : vector<8x256xf32>
    %c0_12 = arith.constant 0 : index
    %c0_13 = arith.constant 0 : index
    %15 = vector.load %arg8[%c0_12, %c0_13] : memref<8x256xf32, #tpu.memory_space<vmem>>, vector<8x256xf32>
    tpu.vector_store %arg8[%c0_12, %c0_13], %14 {strides = array<i32>} : memref<8x256xf32, #tpu.memory_space<vmem>>, vector<8x256xf32>,
    %c0_i32_14 = arith.constant 0 : i32
    %16 = arith.cmpi eq, %arg1, %c0_i32_14 : i32
    %17 = arith.extui %16 : i1 to i32
    %c0_i32_15 = arith.constant 0 : i32
    %18 = arith.cmpi ne, %17, %c0_i32_15 : i32
    scf.if %18 {
      %c0_16 = arith.constant 0 : index
      %c0_17 = arith.constant 0 : index
      %19 = vector.load %arg8[%c0_16, %c0_17] : memref<8x256xf32, #tpu.memory_space<vmem>>, vector<8x256xf32>
      %c0_18 = arith.constant 0 : index
      %c0_19 = arith.constant 0 : index
      %20 = vector.load %arg5[%c0_18, %c0_19] : memref<1x256xf32, #tpu.memory_space<vmem>>, vector<1x256xf32>
      %21 = vector.broadcast %20 : vector<1x256xf32> to vector<8x256xf32>
      %22 = arith.addf %19, %21 : vector<8x256xf32>
      %c0_20 = arith.constant 0 : index
      %c0_21 = arith.constant 0 : index
      %23 = vector.load %arg6[%c0_20, %c0_21] : memref<8x256xf32, #tpu.memory_space<vmem>>, vector<8x256xf32>
      tpu.vector_store %arg6[%c0_20, %c0_21], %22 {strides = array<i32>} : memref<8x256xf32, #tpu.memory_space<vmem>>, vector<8x256xf32>,
    } else {
    }
    return
  }
  func.func @transform_0(%arg0: i32, %arg1: i32) -> (i32, i32) {
    %c0_i32 = arith.constant 0 : i32
    %c0_i32_0 = arith.constant 0 : i32
    return %arg0, %c0_i32 : i32, i32
  }
  func.func @transform_1(%arg0: i32, %arg1: i32) -> (i32, i32) {
    %c0_i32 = arith.constant 0 : i32
    %c0_i32_0 = arith.constant 0 : i32
    return %c0_i32, %arg1 : i32, i32
  }
  func.func @transform_2(%arg0: i32, %arg1: i32) -> (i32, i32) {
    %c0_i32 = arith.constant 0 : i32
    %c0_i32_0 = arith.constant 0 : i32
    return %c0_i32, %arg1 : i32, i32
  }
  func.func @transform_3(%arg0: i32, %arg1: i32) -> (i32, i32) {
    %c0_i32 = arith.constant 0 : i32
    %c0_i32_0 = arith.constant 0 : i32
    %c0_i32_1 = arith.constant 0 : i32
    return %c0_i32, %c0_i32_0 : i32, i32
  }
  func.func @transform_4(%arg0: i32, %arg1: i32) -> (i32, i32) {
    %c0_i32 = arith.constant 0 : i32
    %c0_i32_0 = arith.constant 0 : i32
    return %arg0, %c0_i32 : i32, i32
  }
  func.func @transform_5(%arg0: i32, %arg1: i32) -> (i32, i32) {
    %c0_i32 = arith.constant 0 : i32
    return %arg0, %arg1 : i32, i32
  }
}

</mosaic_0001>

<llo_original>
// kernel: tpu_custom_call.1
$region0: #{tpu_custom_call.1}
  #allocation0 [shape = 'u32[]', space=smem, size = 0x4, offset = 0x4, fixed_abs, tag = 'smem constant byte address 0x4 - core index']
  #allocation1 [shape = 'u32[144,128]{1,0:T(1,128)}', space=vmem, size = 0x12000, scoped, tag = 'internal scratch']
  #allocation2 [shape = 'f32[8,256]{1,0:T(8,128)}', space=vmem, size = 0x2000, scoped, tag = 'scratch operand']
  %s0 = inlined_call_operand.hbm [shape: f32[8,256], index: 0, kind: input, shape index: {}]
  %s1 = inlined_call_operand.hbm [shape: f32[256,2048], index: 1, kind: input, shape index: {}]
  %s2 = inlined_call_operand.hbm [shape: f32[1,2048], index: 2, kind: input, shape index: {}]
  %s3 = inlined_call_operand.hbm [shape: f32[1,256], index: 3, kind: input, shape index: {}]
  %s4 = inlined_call_operand.hbm [shape: f32[8,256], index: 4, kind: output, shape index: {0}]
  %s5 = inlined_call_operand.hbm [shape: f32[8,2048], index: 5, kind: output, shape index: {1}]
  %6 = xla_tuple %s4, %s5
  %s7 = sld [smem:[#allocation0]]
  $region58: #{tpu_custom_call.1} parent=0
    _
  %s9 = ssub.s32 1, %s7
  %s10 = scalar_select 0, %s9, %s7
  $region1: #{tpu_custom_call.1} parent=0
    #allocation3 [shape = 'u8[8192]{0}', space=vmem, size = 0x2000, scoped, tag = 'input window, operand 0, single buffered']
    #allocation4 [shape = 's32[1]{0}', space=sflag, size = 0x4, scoped, tag = 'scoped memory for tpu_custom_call.1']
    #allocation5 [shape = 's32[1]{0}', space=sflag, size = 0x4, scoped, tag = 'scoped memory for tpu_custom_call.1']
    #allocation6 [shape = 'u8[2097152]{0}', space=vmem, size = 0x200000, scoped, tag = 'input window, operand 1, single buffered']
    #allocation7 [shape = 's32[1]{0}', space=sflag, size = 0x4, scoped, tag = 'scoped memory for tpu_custom_call.1']
    #allocation8 [shape = 'u8[8192]{0}', space=vmem, size = 0x2000, scoped, tag = 'input window, operand 2, single buffered']
    #allocation9 [shape = 'u8[1024]{0}', space=vmem, size = 0x400, scoped, tag = 'input window, operand 3, single buffered']
    #allocation10 [shape = 's32[1]{0}', space=sflag, size = 0x4, scoped, tag = 'scoped memory for tpu_custom_call.1']
    #allocation11 [shape = 'u8[8192]{0}', space=vmem, size = 0x2000, scoped, tag = 'output window, operand 0, single buffered']
    #allocation12 [shape = 'u8[65536]{0}', space=vmem, size = 0x10000, scoped, tag = 'output window, operand 1, single buffered']
    #allocation13 [shape = 's32[1]{0}', space=sflag, size = 0x4, scoped, tag = 'scoped memory for tpu_custom_call.1']
    %11 = vsyncpa [#allocation4], 0
    %12 = vsyncpa [#allocation7], 0
    %13 = vsyncpa [#allocation10], 0
    %14 = vsyncpa [#allocation5], 0
    %15 = vsyncpa [#allocation13], 0
    // Predicated region
    $region2: #{tpu_custom_call.1} parent=1 // pred_check
      _
    $region3: #{tpu_custom_call.1} parent=1 // pred_check_branch
      %17 = sbr.rel (0) target = $region5
    $region4: #{tpu_custom_call.1} parent=1 // pred_region
      %s19 = ssub.s32 256, 256
      %20 = vsyncadd [#allocation4], %s19
      %s22 = sshll.u32 [#allocation3], 4
      %s23 = int_to_ptr.vmem [resolvable:$true] %s22
      %25 = dma.hbm_to_vmem [thread:$0]  %s0, 256, %s23, [#allocation4]
    $region5: #{tpu_custom_call.1} parent=1 // pred_fallthru
      _
    // Predicated region
    $region6: #{tpu_custom_call.1} parent=1 // pred_check
      _
    $region7: #{tpu_custom_call.1} parent=1 // pred_check_branch
      %27 = sbr.rel (0) target = $region9
    $region8: #{tpu_custom_call.1} parent=1 // pred_region
      %s29 = ssub.s32 65536, 65536
      %30 = vsyncadd [#allocation7], %s29
      %s31 = sshll.u32 [#allocation6], 4
      %s32 = int_to_ptr.vmem [resolvable:$true] %s31
      %37 = dma.hbm_to_vmem [thread:$0]  %s1, 65536, %s32, [#allocation7], 2048, 2048, 128
    $region9: #{tpu_custom_call.1} parent=1 // pred_fallthru
      _
    // Predicated region
    $region10: #{tpu_custom_call.1} parent=1 // pred_check
      _
    $region11: #{tpu_custom_call.1} parent=1 // pred_check_branch
      %39 = sbr.rel (0) target = $region13
    $region12: #{tpu_custom_call.1} parent=1 // pred_region
      %s41 = ssub.s32 256, 256
      %42 = vsyncadd [#allocation7], %s41
      %s44 = sshll.u32 [#allocation8], 4
      %s45 = int_to_ptr.vmem [resolvable:$true] %s44
      %47 = dma.hbm_to_vmem [thread:$0]  %s2, 256, %s45, [#allocation7]
    $region13: #{tpu_custom_call.1} parent=1 // pred_fallthru
      _
    // Predicated region
    $region14: #{tpu_custom_call.1} parent=1 // pred_check
      _
    $region15: #{tpu_custom_call.1} parent=1 // pred_check_branch
      %49 = sbr.rel (0) target = $region17
    $region16: #{tpu_custom_call.1} parent=1 // pred_region
      %s51 = ssub.s32 32, 32
      %52 = vsyncadd [#allocation10], %s51
      %s54 = sshll.u32 [#allocation9], 4
      %s55 = int_to_ptr.vmem [resolvable:$true] %s54
      %57 = dma.hbm_to_vmem [thread:$0]  %s3, 32, %s55, [#allocation10]
    $region17: #{tpu_custom_call.1} parent=1 // pred_fallthru
      _
    // Predicated region
    $region18: #{tpu_custom_call.1} parent=1 // pred_check
      _
    $region19: #{tpu_custom_call.1} parent=1 // pred_check_branch
      %59 = sbr.rel (0) target = $region21
    $region20: #{tpu_custom_call.1} parent=1 // pred_region
      %60 = dma.done [#allocation4], 256
    $region21: #{tpu_custom_call.1} parent=1 // pred_fallthru
      _
    // Predicated region
    $region22: #{tpu_custom_call.1} parent=1 // pred_check
      _
    $region23: #{tpu_custom_call.1} parent=1 // pred_check_branch
      %62 = sbr.rel (0) target = $region25
    $region24: #{tpu_custom_call.1} parent=1 // pred_region
      %63 = dma.done [#allocation7], 65536
    $region25: #{tpu_custom_call.1} parent=1 // pred_fallthru
      _
    // Predicated region
    $region26: #{tpu_custom_call.1} parent=1 // pred_check
      _
    $region27: #{tpu_custom_call.1} parent=1 // pred_check_branch
      %65 = sbr.rel (0) target = $region29
    $region28: #{tpu_custom_call.1} parent=1 // pred_region
      %66 = dma.done [#allocation7], 256
    $region29: #{tpu_custom_call.1} parent=1 // pred_fallthru
      _
    // Predicated region
    $region30: #{tpu_custom_call.1} parent=1 // pred_check
      _
    $region31: #{tpu_custom_call.1} parent=1 // pred_check_branch
      %68 = sbr.rel (0) target = $region33
    $region32: #{tpu_custom_call.1} parent=1 // pred_region
      %69 = dma.done [#allocation10], 32
    $region33: #{tpu_custom_call.1} parent=1 // pred_fallthru
      _
    %p70 = scmp.eq.s32.totalorder 0, 0
    // Predicated region
    $region34: #{tpu_custom_call.1} parent=1 // pred_check
      %p71 = pneg %p70
    $region35: #{tpu_custom_call.1} parent=1 // pred_check_branch
      %73 = sbr.rel (%p71) target = $region37
    $region36: #{tpu_custom_call.1} parent=1 // pred_region
      %74 = vst [vmem:[#allocation2] sm:$0xff] 0.0
      %75 = vst [vmem:[#allocation2 + $0x8] sm:$0xff] 0.0
    $region37: #{tpu_custom_call.1} parent=1 // pred_fallthru
      _
    %v76 = vld [vmem:[#allocation6] sm:$0xff]
    %v77 = vld [vmem:[#allocation6 + $0x8] sm:$0xff]
    %v78 = vld [vmem:[#allocation6 + $0x10] sm:$0xff]
    %v79 = vld [vmem:[#allocation6 + $0x18] sm:$0xff]
    %v80 = vld [vmem:[#allocation6 + $0x20] sm:$0xff]
    %v81 = vld [vmem:[#allocation6 + $0x28] sm:$0xff]
    %v82 = vld [vmem:[#allocation6 + $0x30] sm:$0xff]
    %v83 = vld [vmem:[#allocation6 + $0x38] sm:$0xff]
    %v84 = vld [vmem:[#allocation6 + $0x40] sm:$0xff]
    %v85 = vld [vmem:[#allocation6 + $0x48] sm:$0xff]
    %v86 = vld [vmem:[#allocation6 + $0x50] sm:$0xff]
    %v87 = vld [vmem:[#allocation6 + $0x58] sm:$0xff]
    %v88 = vld [vmem:[#allocation6 + $0x60] sm:$0xff]
    %v89 = vld [vmem:[#allocation6 + $0x68] sm:$0xff]
    %v90 = vld [vmem:[#allocation6 + $0x70] sm:$0xff]
    %v91 = vld [vmem:[#allocation6 + $0x78] sm:$0xff]
    %v92 = vld [vmem:[#allocation6 + $0x80] sm:$0xff]
    %v93 = vld [vmem:[#allocation6 + $0x88] sm:$0xff]
    %v94 = vld [vmem:[#allocation6 + $0x90] sm:$0xff]
    %v95 = vld [vmem:[#allocation6 + $0x98] sm:$0xff]
    %v96 = vld [vmem:[#allocation6 + $0xa0] sm:$0xff]
    %v97 = vld [vmem:[#allocation6 + $0xa8] sm:$0xff]
    %v98 = vld [vmem:[#allocation6 + $0xb0] sm:$0xff]
    %v99 = vld [vmem:[#allocation6 + $0xb8] sm:$0xff]
    %v100 = vld [vmem:[#allocation6 + $0xc0] sm:$0xff]
    %v101 = vld [vmem:[#allocation6 + $0xc8] sm:$0xff]
    %v102 = vld [vmem:[#allocation6 + $0xd0] sm:$0xff]
    %v103 = vld [vmem:[#allocation6 + $0xd8] sm:$0xff]
    %v104 = vld [vmem:[#allocation6 + $0xe0] sm:$0xff]
    %v105 = vld [vmem:[#allocation6 + $0xe8] sm:$0xff]
    %v106 = vld [vmem:[#allocation6 + $0xf0] sm:$0xff]
    %v107 = vld [vmem:[#allocation6 + $0xf8] sm:$0xff]
    %v108 = vld [vmem:[#allocation6 + $0x100] sm:$0xff]
    %v109 = vld [vmem:[#allocation6 + $0x108] sm:$0xff]
    %v110 = vld [vmem:[#allocation6 + $0x110] sm:$0xff]
    %v111 = vld [vmem:[#allocation6 + $0x118] sm:$0xff]
    %v112 = vld [vmem:[#allocation6 + $0x120] sm:$0xff]
    %v113 = vld [vmem:[#allocation6 + $0x128] sm:$0xff]
    %v114 = vld [vmem:[#allocation6 + $0x130] sm:$0xff]
    %v115 = vld [vmem:[#allocation6 + $0x138] sm:$0xff]
    %v116 = vld [vmem:[#allocation6 + $0x140] sm:$0xff]
    %v117 = vld [vmem:[#allocation6 + $0x148] sm:$0xff]
    %v118 = vld [vmem:[#allocation6 + $0x150] sm:$0xff]
    %v119 = vld [vmem:[#allocation6 + $0x158] sm:$0xff]
    %v120 = vld [vmem:[#allocation6 + $0x160] sm:$0xff]
    %v121 = vld [vmem:[#allocation6 + $0x168] sm:$0xff]
    %v122 = vld [vmem:[#allocation6 + $0x170] sm:$0xff]
    %v123 = vld [vmem:[#allocation6 + $0x178] sm:$0xff]
    %v124 = vld [vmem:[#allocation6 + $0x180] sm:$0xff]
    %v125 = vld [vmem:[#allocation6 + $0x188] sm:$0xff]
    %v126 = vld [vmem:[#allocation6 + $0x190] sm:$0xff]
    %v127 = vld [vmem:[#allocation6 + $0x198] sm:$0xff]
    %v128 = vld [vmem:[#allocation6 + $0x1a0] sm:$0xff]
    %v129 = vld [vmem:[#allocation6 + $0x1a8] sm:$0xff]
    %v130 = vld [vmem:[#allocation6 + $0x1b0] sm:$0xff]
    %v131 = vld [vmem:[#allocation6 + $0x1b8] sm:$0xff]
    %v132 = vld [vmem:[#allocation6 + $0x1c0] sm:$0xff]
    %v133 = vld [vmem:[#allocation6 + $0x1c8] sm:$0xff]
    %v134 = vld [vmem:[#allocation6 + $0x1d0] sm:$0xff]
    %v135 = vld [vmem:[#allocation6 + $0x1d8] sm:$0xff]
    %v136 = vld [vmem:[#allocation6 + $0x1e0] sm:$0xff]
    %v137 = vld [vmem:[#allocation6 + $0x1e8] sm:$0xff]
    %v138 = vld [vmem:[#allocation6 + $0x1f0] sm:$0xff]
    %v139 = vld [vmem:[#allocation6 + $0x1f8] sm:$0xff]
    %v140 = vld [vmem:[#allocation6 + $0x200] sm:$0xff]
    %v141 = vld [vmem:[#allocation6 + $0x208] sm:$0xff]
    %v142 = vld [vmem:[#allocation6 + $0x210] sm:$0xff]
    %v143 = vld [vmem:[#allocation6 + $0x218] sm:$0xff]
    %v144 = vld [vmem:[#allocation6 + $0x220] sm:$0xff]
    %v145 = vld [vmem:[#allocation6 + $0x228] sm:$0xff]
    %v146 = vld [vmem:[#allocation6 + $0x230] sm:$0xff]
    %v147 = vld [vmem:[#allocation6 + $0x238] sm:$0xff]
    %v148 = vld [vmem:[#allocation6 + $0x240] sm:$0xff]
    %v149 = vld [vmem:[#allocation6 + $0x248] sm:$0xff]
    %v150 = vld [vmem:[#allocation6 + $0x250] sm:$0xff]
    %v151 = vld [vmem:[#allocation6 + $0x258] sm:$0xff]
    %v152 = vld [vmem:[#allocation6 + $0x260] sm:$0xff]
    %v153 = vld [vmem:[#allocation6 + $0x268] sm:$0xff]
    %v154 = vld [vmem:[#allocation6 + $0x270] sm:$0xff]
    %v155 = vld [vmem:[#allocation6 + $0x278] sm:$0xff]
    %v156 = vld [vmem:[#allocation6 + $0x280] sm:$0xff]
    %v157 = vld [vmem:[#allocation6 + $0x288] sm:$0xff]
    %v158 = vld [vmem:[#allocation6 + $0x290] sm:$0xff]
    %v159 = vld [vmem:[#allocation6 + $0x298] sm:$0xff]
    %v160 = vld [vmem:[#allocation6 + $0x2a0] sm:$0xff]
    %v161 = vld [vmem:[#allocation6 + $0x2a8] sm:$0xff]
    %v162 = vld [vmem:[#allocation6 + $0x2b0] sm:$0xff]
    %v163 = vld [vmem:[#allocation6 + $0x2b8] sm:$0xff]
    %v164 = vld [vmem:[#allocation6 + $0x2c0] sm:$0xff]
    %v165 = vld [vmem:[#allocation6 + $0x2c8] sm:$0xff]
    %v166 = vld [vmem:[#allocation6 + $0x2d0] sm:$0xff]
    %v167 = vld [vmem:[#allocation6 + $0x2d8] sm:$0xff]
    %v168 = vld [vmem:[#allocation6 + $0x2e0] sm:$0xff]
    %v169 = vld [vmem:[#allocation6 + $0x2e8] sm:$0xff]
    %v170 = vld [vmem:[#allocation6 + $0x2f0] sm:$0xff]
    %v171 = vld [vmem:[#allocation6 + $0x2f8] sm:$0xff]
    %v172 = vld [vmem:[#allocation6 + $0x300] sm:$0xff]
    %v173 = vld [vmem:[#allocation6 + $0x308] sm:$0xff]
    %v174 = vld [vmem:[#allocation6 + $0x310] sm:$0xff]
    %v175 = vld [vmem:[#allocation6 + $0x318] sm:$0xff]
    %v176 = vld [vmem:[#allocation6 + $0x320] sm:$0xff]
    %v177 = vld [vmem:[#allocation6 + $0x328] sm:$0xff]
    %v178 = vld [vmem:[#allocation6 + $0x330] sm:$0xff]
    %v179 = vld [vmem:[#allocation6 + $0x338] sm:$0xff]
    %v180 = vld [vmem:[#allocation6 + $0x340] sm:$0xff]
    %v181 = vld [vmem:[#allocation6 + $0x348] sm:$0xff]
    %v182 = vld [vmem:[#allocation6 + $0x350] sm:$0xff]
    %v183 = vld [vmem:[#allocation6 + $0x358] sm:$0xff]
    %v184 = vld [vmem:[#allocation6 + $0x360] sm:$0xff]
    %v185 = vld [vmem:[#allocation6 + $0x368] sm:$0xff]
    %v186 = vld [vmem:[#allocation6 + $0x370] sm:$0xff]
    %v187 = vld [vmem:[#allocation6 + $0x378] sm:$0xff]
    %v188 = vld [vmem:[#allocation6 + $0x380] sm:$0xff]
    %v189 = vld [vmem:[#allocation6 + $0x388] sm:$0xff]
    %v190 = vld [vmem:[#allocation6 + $0x390] sm:$0xff]
    %v191 = vld [vmem:[#allocation6 + $0x398] sm:$0xff]
    %v192 = vld [vmem:[#allocation6 + $0x3a0] sm:$0xff]
    %v193 = vld [vmem:[#allocation6 + $0x3a8] sm:$0xff]
    %v194 = vld [vmem:[#allocation6 + $0x3b0] sm:$0xff]
    %v195 = vld [vmem:[#allocation6 + $0x3b8] sm:$0xff]
    %v196 = vld [vmem:[#allocation6 + $0x3c0] sm:$0xff]
    %v197 = vld [vmem:[#allocation6 + $0x3c8] sm:$0xff]
    %v198 = vld [vmem:[#allocation6 + $0x3d0] sm:$0xff]
    %v199 = vld [vmem:[#allocation6 + $0x3d8] sm:$0xff]
    %v200 = vld [vmem:[#allocation6 + $0x3e0] sm:$0xff]
    %v201 = vld [vmem:[#allocation6 + $0x3e8] sm:$0xff]
    %v202 = vld [vmem:[#allocation6 + $0x3f0] sm:$0xff]
    %v203 = vld [vmem:[#allocation6 + $0x3f8] sm:$0xff]
    %v204 = vld [vmem:[#allocation6 + $0x400] sm:$0xff]
    %v205 = vld [vmem:[#allocation6 + $0x408] sm:$0xff]
    %v206 = vld [vmem:[#allocation6 + $0x410] sm:$0xff]
    %v207 = vld [vmem:[#allocation6 + $0x418] sm:$0xff]
    %v208 = vld [vmem:[#allocation6 + $0x420] sm:$0xff]
    %v209 = vld [vmem:[#allocation6 + $0x428] sm:$0xff]
    %v210 = vld [vmem:[#allocation6 + $0x430] sm:$0xff]
    %v211 = vld [vmem:[#allocation6 + $0x438] sm:$0xff]
    %v212 = vld [vmem:[#allocation6 + $0x440] sm:$0xff]
    %v213 = vld [vmem:[#allocation6 + $0x448] sm:$0xff]
    %v214 = vld [vmem:[#allocation6 + $0x450] sm:$0xff]
    %v215 = vld [vmem:[#allocation6 + $0x458] sm:$0xff]
    %v216 = vld [vmem:[#allocation6 + $0x460] sm:$0xff]
    %v217 = vld [vmem:[#allocation6 + $0x468] sm:$0xff]
    %v218 = vld [vmem:[#allocation6 + $0x470] sm:$0xff]
    %v219 = vld [vmem:[#allocation6 + $0x478] sm:$0xff]
    %v220 = vld [vmem:[#allocation6 + $0x480] sm:$0xff]
    %v221 = vld [vmem:[#allocation6 + $0x488] sm:$0xff]
    %v222 = vld [vmem:[#allocation6 + $0x490] sm:$0xff]
    %v223 = vld [vmem:[#allocation6 + $0x498] sm:$0xff]
    %v224 = vld [vmem:[#allocation6 + $0x4a0] sm:$0xff]
    %v225 = vld [vmem:[#allocation6 + $0x4a8] sm:$0xff]
    %v226 = vld [vmem:[#allocation6 + $0x4b0] sm:$0xff]
    %v227 = vld [vmem:[#allocation6 + $0x4b8] sm:$0xff]
    %v228 = vld [vmem:[#allocation6 + $0x4c0] sm:$0xff]
    %v229 = vld [vmem:[#allocation6 + $0x4c8] sm:$0xff]
    %v230 = vld [vmem:[#allocation6 + $0x4d0] sm:$0xff]
    %v231 = vld [vmem:[#allocation6 + $0x4d8] sm:$0xff]
    %v232 = vld [vmem:[#allocation6 + $0x4e0] sm:$0xff]
    %v233 = vld [vmem:[#allocation6 + $0x4e8] sm:$0xff]
    %v234 = vld [vmem:[#allocation6 + $0x4f0] sm:$0xff]
    %v235 = vld [vmem:[#allocation6 + $0x4f8] sm:$0xff]
    %v236 = vld [vmem:[#allocation6 + $0x500] sm:$0xff]
    %v237 = vld [vmem:[#allocation6 + $0x508] sm:$0xff]
    %v238 = vld [vmem:[#allocation6 + $0x510] sm:$0xff]
    %v239 = vld [vmem:[#allocation6 + $0x518] sm:$0xff]
    %v240 = vld [vmem:[#allocation6 + $0x520] sm:$0xff]
    %v241 = vld [vmem:[#allocation6 + $0x528] sm:$0xff]
    %v242 = vld [vmem:[#allocation6 + $0x530] sm:$0xff]
    %v243 = vld [vmem:[#allocation6 + $0x538] sm:$0xff]
    %v244 = vld [vmem:[#allocation6 + $0x540] sm:$0xff]
    %v245 = vld [vmem:[#allocation6 + $0x548] sm:$0xff]
    %v246 = vld [vmem:[#allocation6 + $0x550] sm:$0xff]
    %v247 = vld [vmem:[#allocation6 + $0x558] sm:$0xff]
    %v248 = vld [vmem:[#allocation6 + $0x560] sm:$0xff]
    %v249 = vld [vmem:[#allocation6 + $0x568] sm:$0xff]
    %v250 = vld [vmem:[#allocation6 + $0x570] sm:$0xff]
    %v251 = vld [vmem:[#allocation6 + $0x578] sm:$0xff]
    %v252 = vld [vmem:[#allocation6 + $0x580] sm:$0xff]
    %v253 = vld [vmem:[#allocation6 + $0x588] sm:$0xff]
    %v254 = vld [vmem:[#allocation6 + $0x590] sm:$0xff]
    %v255 = vld [vmem:[#allocation6 + $0x598] sm:$0xff]
    %v256 = vld [vmem:[#allocation6 + $0x5a0] sm:$0xff]
    %v257 = vld [vmem:[#allocation6 + $0x5a8] sm:$0xff]
    %v258 = vld [vmem:[#allocation6 + $0x5b0] sm:$0xff]
    %v259 = vld [vmem:[#allocation6 + $0x5b8] sm:$0xff]
    %v260 = vld [vmem:[#allocation6 + $0x5c0] sm:$0xff]
    %v261 = vld [vmem:[#allocation6 + $0x5c8] sm:$0xff]
    %v262 = vld [vmem:[#allocation6 + $0x5d0] sm:$0xff]
    %v263 = vld [vmem:[#allocation6 + $0x5d8] sm:$0xff]
    %v264 = vld [vmem:[#allocation6 + $0x5e0] sm:$0xff]
    %v265 = vld [vmem:[#allocation6 + $0x5e8] sm:$0xff]
    %v266 = vld [vmem:[#allocation6 + $0x5f0] sm:$0xff]
    %v267 = vld [vmem:[#allocation6 + $0x5f8] sm:$0xff]
    %v268 = vld [vmem:[#allocation6 + $0x600] sm:$0xff]
    %v269 = vld [vmem:[#allocation6 + $0x608] sm:$0xff]
    %v270 = vld [vmem:[#allocation6 + $0x610] sm:$0xff]
    %v271 = vld [vmem:[#allocation6 + $0x618] sm:$0xff]
    %v272 = vld [vmem:[#allocation6 + $0x620] sm:$0xff]
    %v273 = vld [vmem:[#allocation6 + $0x628] sm:$0xff]
    %v274 = vld [vmem:[#allocation6 + $0x630] sm:$0xff]
    %v275 = vld [vmem:[#allocation6 + $0x638] sm:$0xff]
    %v276 = vld [vmem:[#allocation6 + $0x640] sm:$0xff]
    %v277 = vld [vmem:[#allocation6 + $0x648] sm:$0xff]
    %v278 = vld [vmem:[#allocation6 + $0x650] sm:$0xff]
    %v279 = vld [vmem:[#allocation6 + $0x658] sm:$0xff]
    %v280 = vld [vmem:[#allocation6 + $0x660] sm:$0xff]
    %v281 = vld [vmem:[#allocation6 + $0x668] sm:$0xff]
    %v282 = vld [vmem:[#allocation6 + $0x670] sm:$0xff]
    %v283 = vld [vmem:[#allocation6 + $0x678] sm:$0xff]
    %v284 = vld [vmem:[#allocation6 + $0x680] sm:$0xff]
    %v285 = vld [vmem:[#allocation6 + $0x688] sm:$0xff]
    %v286 = vld [vmem:[#allocation6 + $0x690] sm:$0xff]
    %v287 = vld [vmem:[#allocation6 + $0x698] sm:$0xff]
    %v288 = vld [vmem:[#allocation6 + $0x6a0] sm:$0xff]
    %v289 = vld [vmem:[#allocation6 + $0x6a8] sm:$0xff]
    %v290 = vld [vmem:[#allocation6 + $0x6b0] sm:$0xff]
    %v291 = vld [vmem:[#allocation6 + $0x6b8] sm:$0xff]
    %v292 = vld [vmem:[#allocation6 + $0x6c0] sm:$0xff]
    %v293 = vld [vmem:[#allocation6 + $0x6c8] sm:$0xff]
    %v294 = vld [vmem:[#allocation6 + $0x6d0] sm:$0xff]
    %v295 = vld [vmem:[#allocation6 + $0x6d8] sm:$0xff]
    %v296 = vld [vmem:[#allocation6 + $0x6e0] sm:$0xff]
    %v297 = vld [vmem:[#allocation6 + $0x6e8] sm:$0xff]
    %v298 = vld [vmem:[#allocation6 + $0x6f0] sm:$0xff]
    %v299 = vld [vmem:[#allocation6 + $0x6f8] sm:$0xff]
    %v300 = vld [vmem:[#allocation6 + $0x700] sm:$0xff]
    %v301 = vld [vmem:[#allocation6 + $0x708] sm:$0xff]
    %v302 = vld [vmem:[#allocation6 + $0x710] sm:$0xff]
    %v303 = vld [vmem:[#allocation6 + $0x718] sm:$0xff]
    %v304 = vld [vmem:[#allocation6 + $0x720] sm:$0xff]
    %v305 = vld [vmem:[#allocation6 + $0x728] sm:$0xff]
    %v306 = vld [vmem:[#allocation6 + $0x730] sm:$0xff]
    %v307 = vld [vmem:[#allocation6 + $0x738] sm:$0xff]
    %v308 = vld [vmem:[#allocation6 + $0x740] sm:$0xff]
    %v309 = vld [vmem:[#allocation6 + $0x748] sm:$0xff]
    %v310 = vld [vmem:[#allocation6 + $0x750] sm:$0xff]
    %v311 = vld [vmem:[#allocation6 + $0x758] sm:$0xff]
    %v312 = vld [vmem:[#allocation6 + $0x760] sm:$0xff]
    %v313 = vld [vmem:[#allocation6 + $0x768] sm:$0xff]
    %v314 = vld [vmem:[#allocation6 + $0x770] sm:$0xff]
    %v315 = vld [vmem:[#allocation6 + $0x778] sm:$0xff]
    %v316 = vld [vmem:[#allocation6 + $0x780] sm:$0xff]
    %v317 = vld [vmem:[#allocation6 + $0x788] sm:$0xff]
    %v318 = vld [vmem:[#allocation6 + $0x790] sm:$0xff]
    %v319 = vld [vmem:[#allocation6 + $0x798] sm:$0xff]
    %v320 = vld [vmem:[#allocation6 + $0x7a0] sm:$0xff]
    %v321 = vld [vmem:[#allocation6 + $0x7a8] sm:$0xff]
    %v322 = vld [vmem:[#allocation6 + $0x7b0] sm:$0xff]
    %v323 = vld [vmem:[#allocation6 + $0x7b8] sm:$0xff]
    %v324 = vld [vmem:[#allocation6 + $0x7c0] sm:$0xff]
    %v325 = vld [vmem:[#allocation6 + $0x7c8] sm:$0xff]
    %v326 = vld [vmem:[#allocation6 + $0x7d0] sm:$0xff]
    %v327 = vld [vmem:[#allocation6 + $0x7d8] sm:$0xff]
    %v328 = vld [vmem:[#allocation6 + $0x7e0] sm:$0xff]
    %v329 = vld [vmem:[#allocation6 + $0x7e8] sm:$0xff]
    %v330 = vld [vmem:[#allocation6 + $0x7f0] sm:$0xff]
    %v331 = vld [vmem:[#allocation6 + $0x7f8] sm:$0xff]
    %v332 = vld [vmem:[#allocation6 + $0x800] sm:$0xff]
    %v333 = vld [vmem:[#allocation6 + $0x808] sm:$0xff]
    %v334 = vld [vmem:[#allocation6 + $0x810] sm:$0xff]
    %v335 = vld [vmem:[#allocation6 + $0x818] sm:$0xff]
    %v336 = vld [vmem:[#allocation6 + $0x820] sm:$0xff]
    %v337 = vld [vmem:[#allocation6 + $0x828] sm:$0xff]
    %v338 = vld [vmem:[#allocation6 + $0x830] sm:$0xff]
    %v339 = vld [vmem:[#allocation6 + $0x838] sm:$0xff]
    %v340 = vld [vmem:[#allocation6 + $0x840] sm:$0xff]
    %v341 = vld [vmem:[#allocation6 + $0x848] sm:$0xff]
    %v342 = vld [vmem:[#allocation6 + $0x850] sm:$0xff]
    %v343 = vld [vmem:[#allocation6 + $0x858] sm:$0xff]
    %v344 = vld [vmem:[#allocation6 + $0x860] sm:$0xff]
    %v345 = vld [vmem:[#allocation6 + $0x868] sm:$0xff]
    %v346 = vld [vmem:[#allocation6 + $0x870] sm:$0xff]
    %v347 = vld [vmem:[#allocation6 + $0x878] sm:$0xff]
    %v348 = vld [vmem:[#allocation6 + $0x880] sm:$0xff]
    %v349 = vld [vmem:[#allocation6 + $0x888] sm:$0xff]
    %v350 = vld [vmem:[#allocation6 + $0x890] sm:$0xff]
    %v351 = vld [vmem:[#allocation6 + $0x898] sm:$0xff]
    %v352 = vld [vmem:[#allocation6 + $0x8a0] sm:$0xff]
    %v353 = vld [vmem:[#allocation6 + $0x8a8] sm:$0xff]
    %v354 = vld [vmem:[#allocation6 + $0x8b0] sm:$0xff]
    %v355 = vld [vmem:[#allocation6 + $0x8b8] sm:$0xff]
    %v356 = vld [vmem:[#allocation6 + $0x8c0] sm:$0xff]
    %v357 = vld [vmem:[#allocation6 + $0x8c8] sm:$0xff]
    %v358 = vld [vmem:[#allocation6 + $0x8d0] sm:$0xff]
    %v359 = vld [vmem:[#allocation6 + $0x8d8] sm:$0xff]
    %v360 = vld [vmem:[#allocation6 + $0x8e0] sm:$0xff]
    %v361 = vld [vmem:[#allocation6 + $0x8e8] sm:$0xff]
    %v362 = vld [vmem:[#allocation6 + $0x8f0] sm:$0xff]
    %v363 = vld [vmem:[#allocation6 + $0x8f8] sm:$0xff]
    %v364 = vld [vmem:[#allocation6 + $0x900] sm:$0xff]
    %v365 = vld [vmem:[#allocation6 + $0x908] sm:$0xff]
    %v366 = vld [vmem:[#allocation6 + $0x910] sm:$0xff]
    %v367 = vld [vmem:[#allocation6 + $0x918] sm:$0xff]
    %v368 = vld [vmem:[#allocation6 + $0x920] sm:$0xff]
    %v369 = vld [vmem:[#allocation6 + $0x928] sm:$0xff]
    %v370 = vld [vmem:[#allocation6 + $0x930] sm:$0xff]
    %v371 = vld [vmem:[#allocation6 + $0x938] sm:$0xff]
    %v372 = vld [vmem:[#allocation6 + $0x940] sm:$0xff]
    %v373 = vld [vmem:[#allocation6 + $0x948] sm:$0xff]
    %v374 = vld [vmem:[#allocation6 + $0x950] sm:$0xff]
    %v375 = vld [vmem:[#allocation6 + $0x958] sm:$0xff]
    %v376 = vld [vmem:[#allocation6 + $0x960] sm:$0xff]
    %v377 = vld [vmem:[#allocation6 + $0x968] sm:$0xff]
    %v378 = vld [vmem:[#allocation6 + $0x970] sm:$0xff]
    %v379 = vld [vmem:[#allocation6 + $0x978] sm:$0xff]
    %v380 = vld [vmem:[#allocation6 + $0x980] sm:$0xff]
    %v381 = vld [vmem:[#allocation6 + $0x988] sm:$0xff]
    %v382 = vld [vmem:[#allocation6 + $0x990] sm:$0xff]
    %v383 = vld [vmem:[#allocation6 + $0x998] sm:$0xff]
    %v384 = vld [vmem:[#allocation6 + $0x9a0] sm:$0xff]
    %v385 = vld [vmem:[#allocation6 + $0x9a8] sm:$0xff]
    %v386 = vld [vmem:[#allocation6 + $0x9b0] sm:$0xff]
    %v387 = vld [vmem:[#allocation6 + $0x9b8] sm:$0xff]
    %v388 = vld [vmem:[#allocation6 + $0x9c0] sm:$0xff]
    %v389 = vld [vmem:[#allocation6 + $0x9c8] sm:$0xff]
    %v390 = vld [vmem:[#allocation6 + $0x9d0] sm:$0xff]
    %v391 = vld [vmem:[#allocation6 + $0x9d8] sm:$0xff]
    %v392 = vld [vmem:[#allocation6 + $0x9e0] sm:$0xff]
    %v393 = vld [vmem:[#allocation6 + $0x9e8] sm:$0xff]
    %v394 = vld [vmem:[#allocation6 + $0x9f0] sm:$0xff]
    %v395 = vld [vmem:[#allocation6 + $0x9f8] sm:$0xff]
    %v396 = vld [vmem:[#allocation6 + $0xa00] sm:$0xff]
    %v397 = vld [vmem:[#allocation6 + $0xa08] sm:$0xff]
    %v398 = vld [vmem:[#allocation6 + $0xa10] sm:$0xff]
    %v399 = vld [vmem:[#allocation6 + $0xa18] sm:$0xff]
    %v400 = vld [vmem:[#allocation6 + $0xa20] sm:$0xff]
    %v401 = vld [vmem:[#allocation6 + $0xa28] sm:$0xff]
    %v402 = vld [vmem:[#allocation6 + $0xa30] sm:$0xff]
    %v403 = vld [vmem:[#allocation6 + $0xa38] sm:$0xff]
    %v404 = vld [vmem:[#allocation6 + $0xa40] sm:$0xff]
    %v405 = vld [vmem:[#allocation6 + $0xa48] sm:$0xff]
    %v406 = vld [vmem:[#allocation6 + $0xa50] sm:$0xff]
    %v407 = vld [vmem:[#allocation6 + $0xa58] sm:$0xff]
    %v408 = vld [vmem:[#allocation6 + $0xa60] sm:$0xff]
    %v409 = vld [vmem:[#allocation6 + $0xa68] sm:$0xff]
    %v410 = vld [vmem:[#allocation6 + $0xa70] sm:$0xff]
    %v411 = vld [vmem:[#allocation6 + $0xa78] sm:$0xff]
    %v412 = vld [vmem:[#allocation6 + $0xa80] sm:$0xff]
    %v413 = vld [vmem:[#allocation6 + $0xa88] sm:$0xff]
    %v414 = vld [vmem:[#allocation6 + $0xa90] sm:$0xff]
    %v415 = vld [vmem:[#allocation6 + $0xa98] sm:$0xff]
    %v416 = vld [vmem:[#allocation6 + $0xaa0] sm:$0xff]
    %v417 = vld [vmem:[#allocation6 + $0xaa8] sm:$0xff]
    %v418 = vld [vmem:[#allocation6 + $0xab0] sm:$0xff]
    %v419 = vld [vmem:[#allocation6 + $0xab8] sm:$0xff]
    %v420 = vld [vmem:[#allocation6 + $0xac0] sm:$0xff]
    %v421 = vld [vmem:[#allocation6 + $0xac8] sm:$0xff]
    %v422 = vld [vmem:[#allocation6 + $0xad0] sm:$0xff]
    %v423 = vld [vmem:[#allocation6 + $0xad8] sm:$0xff]
    %v424 = vld [vmem:[#allocation6 + $0xae0] sm:$0xff]
    %v425 = vld [vmem:[#allocation6 + $0xae8] sm:$0xff]
    %v426 = vld [vmem:[#allocation6 + $0xaf0] sm:$0xff]
    %v427 = vld [vmem:[#allocation6 + $0xaf8] sm:$0xff]
    %v428 = vld [vmem:[#allocation6 + $0xb00] sm:$0xff]
    %v429 = vld [vmem:[#allocation6 + $0xb08] sm:$0xff]
    %v430 = vld [vmem:[#allocation6 + $0xb10] sm:$0xff]
    %v431 = vld [vmem:[#allocation6 + $0xb18] sm:$0xff]
    %v432 = vld [vmem:[#allocation6 + $0xb20] sm:$0xff]
    %v433 = vld [vmem:[#allocation6 + $0xb28] sm:$0xff]
    %v434 = vld [vmem:[#allocation6 + $0xb30] sm:$0xff]
    %v435 = vld [vmem:[#allocation6 + $0xb38] sm:$0xff]
    %v436 = vld [vmem:[#allocation6 + $0xb40] sm:$0xff]
    %v437 = vld [vmem:[#allocation6 + $0xb48] sm:$0xff]
    %v438 = vld [vmem:[#allocation6 + $0xb50] sm:$0xff]
    %v439 = vld [vmem:[#allocation6 + $0xb58] sm:$0xff]
    %v440 = vld [vmem:[#allocation6 + $0xb60] sm:$0xff]
    %v441 = vld [vmem:[#allocation6 + $0xb68] sm:$0xff]
    %v442 = vld [vmem:[#allocation6 + $0xb70] sm:$0xff]
    %v443 = vld [vmem:[#allocation6 + $0xb78] sm:$0xff]
    %v444 = vld [vmem:[#allocation6 + $0xb80] sm:$0xff]
    %v445 = vld [vmem:[#allocation6 + $0xb88] sm:$0xff]
    %v446 = vld [vmem:[#allocation6 + $0xb90] sm:$0xff]
    %v447 = vld [vmem:[#allocation6 + $0xb98] sm:$0xff]
    %v448 = vld [vmem:[#allocation6 + $0xba0] sm:$0xff]
    %v449 = vld [vmem:[#allocation6 + $0xba8] sm:$0xff]
    %v450 = vld [vmem:[#allocation6 + $0xbb0] sm:$0xff]
    %v451 = vld [vmem:[#allocation6 + $0xbb8] sm:$0xff]
    %v452 = vld [vmem:[#allocation6 + $0xbc0] sm:$0xff]
    %v453 = vld [vmem:[#allocation6 + $0xbc8] sm:$0xff]
    %v454 = vld [vmem:[#allocation6 + $0xbd0] sm:$0xff]
    %v455 = vld [vmem:[#allocation6 + $0xbd8] sm:$0xff]
    %v456 = vld [vmem:[#allocation6 + $0xbe0] sm:$0xff]
    %v457 = vld [vmem:[#allocation6 + $0xbe8] sm:$0xff]
    %v458 = vld [vmem:[#allocation6 + $0xbf0] sm:$0xff]
    %v459 = vld [vmem:[#allocation6 + $0xbf8] sm:$0xff]
    %v460 = vld [vmem:[#allocation6 + $0xc00] sm:$0xff]
    %v461 = vld [vmem:[#allocation6 + $0xc08] sm:$0xff]
    %v462 = vld [vmem:[#allocation6 + $0xc10] sm:$0xff]
    %v463 = vld [vmem:[#allocation6 + $0xc18] sm:$0xff]
    %v464 = vld [vmem:[#allocation6 + $0xc20] sm:$0xff]
    %v465 = vld [vmem:[#allocation6 + $0xc28] sm:$0xff]
    %v466 = vld [vmem:[#allocation6 + $0xc30] sm:$0xff]
    %v467 = vld [vmem:[#allocation6 + $0xc38] sm:$0xff]
    %v468 = vld [vmem:[#allocation6 + $0xc40] sm:$0xff]
    %v469 = vld [vmem:[#allocation6 + $0xc48] sm:$0xff]
    %v470 = vld [vmem:[#allocation6 + $0xc50] sm:$0xff]
    %v471 = vld [vmem:[#allocation6 + $0xc58] sm:$0xff]
    %v472 = vld [vmem:[#allocation6 + $0xc60] sm:$0xff]
    %v473 = vld [vmem:[#allocation6 + $0xc68] sm:$0xff]
    %v474 = vld [vmem:[#allocation6 + $0xc70] sm:$0xff]
    %v475 = vld [vmem:[#allocation6 + $0xc78] sm:$0xff]
    %v476 = vld [vmem:[#allocation6 + $0xc80] sm:$0xff]
    %v477 = vld [vmem:[#allocation6 + $0xc88] sm:$0xff]
    %v478 = vld [vmem:[#allocation6 + $0xc90] sm:$0xff]
    %v479 = vld [vmem:[#allocation6 + $0xc98] sm:$0xff]
    %v480 = vld [vmem:[#allocation6 + $0xca0] sm:$0xff]
    %v481 = vld [vmem:[#allocation6 + $0xca8] sm:$0xff]
    %v482 = vld [vmem:[#allocation6 + $0xcb0] sm:$0xff]
    %v483 = vld [vmem:[#allocation6 + $0xcb8] sm:$0xff]
    %v484 = vld [vmem:[#allocation6 + $0xcc0] sm:$0xff]
    %v485 = vld [vmem:[#allocation6 + $0xcc8] sm:$0xff]
    %v486 = vld [vmem:[#allocation6 + $0xcd0] sm:$0xff]
    %v487 = vld [vmem:[#allocation6 + $0xcd8] sm:$0xff]
    %v488 = vld [vmem:[#allocation6 + $0xce0] sm:$0xff]
    %v489 = vld [vmem:[#allocation6 + $0xce8] sm:$0xff]
    %v490 = vld [vmem:[#allocation6 + $0xcf0] sm:$0xff]
    %v491 = vld [vmem:[#allocation6 + $0xcf8] sm:$0xff]
    %v492 = vld [vmem:[#allocation6 + $0xd00] sm:$0xff]
    %v493 = vld [vmem:[#allocation6 + $0xd08] sm:$0xff]
    %v494 = vld [vmem:[#allocation6 + $0xd10] sm:$0xff]
    %v495 = vld [vmem:[#allocation6 + $0xd18] sm:$0xff]
    %v496 = vld [vmem:[#allocation6 + $0xd20] sm:$0xff]
    %v497 = vld [vmem:[#allocation6 + $0xd28] sm:$0xff]
    %v498 = vld [vmem:[#allocation6 + $0xd30] sm:$0xff]
    %v499 = vld [vmem:[#allocation6 + $0xd38] sm:$0xff]
    %v500 = vld [vmem:[#allocation6 + $0xd40] sm:$0xff]
    %v501 = vld [vmem:[#allocation6 + $0xd48] sm:$0xff]
    %v502 = vld [vmem:[#allocation6 + $0xd50] sm:$0xff]
    %v503 = vld [vmem:[#allocation6 + $0xd58] sm:$0xff]
    %v504 = vld [vmem:[#allocation6 + $0xd60] sm:$0xff]
    %v505 = vld [vmem:[#allocation6 + $0xd68] sm:$0xff]
    %v506 = vld [vmem:[#allocation6 + $0xd70] sm:$0xff]
    %v507 = vld [vmem:[#allocation6 + $0xd78] sm:$0xff]
    %v508 = vld [vmem:[#allocation6 + $0xd80] sm:$0xff]
    %v509 = vld [vmem:[#allocation6 + $0xd88] sm:$0xff]
    %v510 = vld [vmem:[#allocation6 + $0xd90] sm:$0xff]
    %v511 = vld [vmem:[#allocation6 + $0xd98] sm:$0xff]
    %v512 = vld [vmem:[#allocation6 + $0xda0] sm:$0xff]
    %v513 = vld [vmem:[#allocation6 + $0xda8] sm:$0xff]
    %v514 = vld [vmem:[#allocation6 + $0xdb0] sm:$0xff]
    %v515 = vld [vmem:[#allocation6 + $0xdb8] sm:$0xff]
    %v516 = vld [vmem:[#allocation6 + $0xdc0] sm:$0xff]
    %v517 = vld [vmem:[#allocation6 + $0xdc8] sm:$0xff]
    %v518 = vld [vmem:[#allocation6 + $0xdd0] sm:$0xff]
    %v519 = vld [vmem:[#allocation6 + $0xdd8] sm:$0xff]
    %v520 = vld [vmem:[#allocation6 + $0xde0] sm:$0xff]
    %v521 = vld [vmem:[#allocation6 + $0xde8] sm:$0xff]
    %v522 = vld [vmem:[#allocation6 + $0xdf0] sm:$0xff]
    %v523 = vld [vmem:[#allocation6 + $0xdf8] sm:$0xff]
    %v524 = vld [vmem:[#allocation6 + $0xe00] sm:$0xff]
    %v525 = vld [vmem:[#allocation6 + $0xe08] sm:$0xff]
    %v526 = vld [vmem:[#allocation6 + $0xe10] sm:$0xff]
    %v527 = vld [vmem:[#allocation6 + $0xe18] sm:$0xff]
    %v528 = vld [vmem:[#allocation6 + $0xe20] sm:$0xff]
    %v529 = vld [vmem:[#allocation6 + $0xe28] sm:$0xff]
    %v530 = vld [vmem:[#allocation6 + $0xe30] sm:$0xff]
    %v531 = vld [vmem:[#allocation6 + $0xe38] sm:$0xff]
    %v532 = vld [vmem:[#allocation6 + $0xe40] sm:$0xff]
    %v533 = vld [vmem:[#allocation6 + $0xe48] sm:$0xff]
    %v534 = vld [vmem:[#allocation6 + $0xe50] sm:$0xff]
    %v535 = vld [vmem:[#allocation6 + $0xe58] sm:$0xff]
    %v536 = vld [vmem:[#allocation6 + $0xe60] sm:$0xff]
    %v537 = vld [vmem:[#allocation6 + $0xe68] sm:$0xff]
    %v538 = vld [vmem:[#allocation6 + $0xe70] sm:$0xff]
    %v539 = vld [vmem:[#allocation6 + $0xe78] sm:$0xff]
    %v540 = vld [vmem:[#allocation6 + $0xe80] sm:$0xff]
    %v541 = vld [vmem:[#allocation6 + $0xe88] sm:$0xff]
    %v542 = vld [vmem:[#allocation6 + $0xe90] sm:$0xff]
    %v543 = vld [vmem:[#allocation6 + $0xe98] sm:$0xff]
    %v544 = vld [vmem:[#allocation6 + $0xea0] sm:$0xff]
    %v545 = vld [vmem:[#allocation6 + $0xea8] sm:$0xff]
    %v546 = vld [vmem:[#allocation6 + $0xeb0] sm:$0xff]
    %v547 = vld [vmem:[#allocation6 + $0xeb8] sm:$0xff]
    %v548 = vld [vmem:[#allocation6 + $0xec0] sm:$0xff]
    %v549 = vld [vmem:[#allocation6 + $0xec8] sm:$0xff]
    %v550 = vld [vmem:[#allocation6 + $0xed0] sm:$0xff]
    %v551 = vld [vmem:[#allocation6 + $0xed8] sm:$0xff]
    %v552 = vld [vmem:[#allocation6 + $0xee0] sm:$0xff]
    %v553 = vld [vmem:[#allocation6 + $0xee8] sm:$0xff]
    %v554 = vld [vmem:[#allocation6 + $0xef0] sm:$0xff]
    %v555 = vld [vmem:[#allocation6 + $0xef8] sm:$0xff]
    %v556 = vld [vmem:[#allocation6 + $0xf00] sm:$0xff]
    %v557 = vld [vmem:[#allocation6 + $0xf08] sm:$0xff]
    %v558 = vld [vmem:[#allocation6 + $0xf10] sm:$0xff]
    %v559 = vld [vmem:[#allocation6 + $0xf18] sm:$0xff]
    %v560 = vld [vmem:[#allocation6 + $0xf20] sm:$0xff]
    %v561 = vld [vmem:[#allocation6 + $0xf28] sm:$0xff]
    %v562 = vld [vmem:[#allocation6 + $0xf30] sm:$0xff]
    %v563 = vld [vmem:[#allocation6 + $0xf38] sm:$0xff]
    %v564 = vld [vmem:[#allocation6 + $0xf40] sm:$0xff]
    %v565 = vld [vmem:[#allocation6 + $0xf48] sm:$0xff]
    %v566 = vld [vmem:[#allocation6 + $0xf50] sm:$0xff]
    %v567 = vld [vmem:[#allocation6 + $0xf58] sm:$0xff]
    %v568 = vld [vmem:[#allocation6 + $0xf60] sm:$0xff]
    %v569 = vld [vmem:[#allocation6 + $0xf68] sm:$0xff]
    %v570 = vld [vmem:[#allocation6 + $0xf70] sm:$0xff]
    %v571 = vld [vmem:[#allocation6 + $0xf78] sm:$0xff]
    %v572 = vld [vmem:[#allocation6 + $0xf80] sm:$0xff]
    %v573 = vld [vmem:[#allocation6 + $0xf88] sm:$0xff]
    %v574 = vld [vmem:[#allocation6 + $0xf90] sm:$0xff]
    %v575 = vld [vmem:[#allocation6 + $0xf98] sm:$0xff]
    %v576 = vld [vmem:[#allocation6 + $0xfa0] sm:$0xff]
    %v577 = vld [vmem:[#allocation6 + $0xfa8] sm:$0xff]
    %v578 = vld [vmem:[#allocation6 + $0xfb0] sm:$0xff]
    %v579 = vld [vmem:[#allocation6 + $0xfb8] sm:$0xff]
    %v580 = vld [vmem:[#allocation6 + $0xfc0] sm:$0xff]
    %v581 = vld [vmem:[#allocation6 + $0xfc8] sm:$0xff]
    %v582 = vld [vmem:[#allocation6 + $0xfd0] sm:$0xff]
    %v583 = vld [vmem:[#allocation6 + $0xfd8] sm:$0xff]
    %v584 = vld [vmem:[#allocation6 + $0xfe0] sm:$0xff]
    %v585 = vld [vmem:[#allocation6 + $0xfe8] sm:$0xff]
    %v586 = vld [vmem:[#allocation6 + $0xff0] sm:$0xff]
    %v587 = vld [vmem:[#allocation6 + $0xff8] sm:$0xff]
    %v588 = vld [vmem:[#allocation3] sm:$0xff]
    %v589 = vld [vmem:[#allocation3 + $0x8] sm:$0xff]
    %v590 = vld [vmem:[#allocation8] sm:$0xff]
    %v591 = vld [vmem:[#allocation8 + $0x8] sm:$0xff]
    %v594 = vlaneseq
    %v595 = vshrl.u32 %v594, 7
    %v596 = vsub.s32 0, %v595
    %v597 = vrot.slane %v590, %v596
    %v598 = vlaneseq
    %v599 = vshrl.u32 %v598, 7
    %v600 = vsub.s32 1, %v599
    %v601 = vrot.slane %v590, %v600
    %v602 = vlaneseq
    %v603 = vshrl.u32 %v602, 7
    %v604 = vsub.s32 2, %v603
    %v605 = vrot.slane %v590, %v604
    %v606 = vlaneseq
    %v607 = vshrl.u32 %v606, 7
    %v608 = vsub.s32 3, %v607
    %v609 = vrot.slane %v590, %v608
    %v610 = vlaneseq
    %v611 = vshrl.u32 %v610, 7
    %v612 = vsub.s32 4, %v611
    %v613 = vrot.slane %v590, %v612
    %v614 = vlaneseq
    %v615 = vshrl.u32 %v614, 7
    %v616 = vsub.s32 5, %v615
    %v617 = vrot.slane %v590, %v616
    %v618 = vlaneseq
    %v619 = vshrl.u32 %v618, 7
    %v620 = vsub.s32 6, %v619
    %v621 = vrot.slane %v590, %v620
    %v622 = vlaneseq
    %v623 = vshrl.u32 %v622, 7
    %v624 = vsub.s32 7, %v623
    %v625 = vrot.slane %v590, %v624
    %v626 = vlaneseq
    %v627 = vshrl.u32 %v626, 7
    %v628 = vsub.s32 0, %v627
    %v629 = vrot.slane %v591, %v628
    %v630 = vlaneseq
    %v631 = vshrl.u32 %v630, 7
    %v632 = vsub.s32 1, %v631
    %v633 = vrot.slane %v591, %v632
    %v634 = vlaneseq
    %v635 = vshrl.u32 %v634, 7
    %v636 = vsub.s32 2, %v635
    %v637 = vrot.slane %v591, %v636
    %v638 = vlaneseq
    %v639 = vshrl.u32 %v638, 7
    %v640 = vsub.s32 3, %v639
    %v641 = vrot.slane %v591, %v640
    %v642 = vlaneseq
    %v643 = vshrl.u32 %v642, 7
    %v644 = vsub.s32 4, %v643
    %v645 = vrot.slane %v591, %v644
    %v646 = vlaneseq
    %v647 = vshrl.u32 %v646, 7
    %v648 = vsub.s32 5, %v647
    %v649 = vrot.slane %v591, %v648
    %v650 = vlaneseq
    %v651 = vshrl.u32 %v650, 7
    %v652 = vsub.s32 6, %v651
    %v653 = vrot.slane %v591, %v652
    %v654 = vlaneseq
    %v655 = vshrl.u32 %v654, 7
    %v656 = vsub.s32 7, %v655
    %v657 = vrot.slane %v591, %v656
    %674 = vmatprep.subr.mxu0 %v77
    %675 = vmatpush1.msra.mxu0 %v76
    %676 = vmatprep.subr.mxu0 %v93
    %677 = vmatpush1.msra.mxu0 %v92
    %678 = vmatprep.subr.mxu0 %v109
    %679 = vmatpush1.msra.mxu0 %v108
    %680 = vmatprep.subr.mxu0 %v125
    %681 = vmatpush1.msra.mxu0 %v124
    %682 = vmatprep.subr.mxu0 %v141
    %683 = vmatpush1.msra.mxu0 %v140
    %684 = vmatprep.subr.mxu0 %v157
    %685 = vmatpush1.msra.mxu0 %v156
    %686 = vmatprep.subr.mxu0 %v173
    %687 = vmatpush1.msra.mxu0 %v172
    %688 = vmatprep.subr.mxu0 %v189
    %689 = vmatpush1.msra.mxu0 %v188
    %690 = vmatprep.subr.mxu0 %v205
    %691 = vmatpush1.msra.mxu0 %v204
    %692 = vmatprep.subr.mxu0 %v221
    %693 = vmatpush1.msra.mxu0 %v220
    %694 = vmatprep.subr.mxu0 %v237
    %695 = vmatpush1.msra.mxu0 %v236
    %696 = vmatprep.subr.mxu0 %v253
    %697 = vmatpush1.msra.mxu0 %v252
    %698 = vmatprep.subr.mxu0 %v269
    %699 = vmatpush1.msra.mxu0 %v268
    %700 = vmatprep.subr.mxu0 %v285
    %701 = vmatpush1.msra.mxu0 %v284
    %702 = vmatprep.subr.mxu0 %v301
    %703 = vmatpush1.msra.mxu0 %v300
    %704 = vmatprep.subr.mxu0 %v317
    %705 = vmatpush1.msra.mxu0 %v316
    %706 = vmatprep.subr.mxu0 %v333
    %707 = vmatpush1.msra.mxu0 %v332
    %708 = vmatprep.subr.mxu0 %v349
    %709 = vmatpush1.msra.mxu0 %v348
    %710 = vmatprep.subr.mxu0 %v365
    %711 = vmatpush1.msra.mxu0 %v364
    %712 = vmatprep.subr.mxu0 %v381
    %713 = vmatpush1.msra.mxu0 %v380
    %714 = vmatprep.subr.mxu0 %v397
    %715 = vmatpush1.msra.mxu0 %v396
    %716 = vmatprep.subr.mxu0 %v413
    %717 = vmatpush1.msra.mxu0 %v412
    %718 = vmatprep.subr.mxu0 %v429
    %719 = vmatpush1.msra.mxu0 %v428
    %720 = vmatprep.subr.mxu0 %v445
    %721 = vmatpush1.msra.mxu0 %v444
    %722 = vmatprep.subr.mxu0 %v461
    %723 = vmatpush1.msra.mxu0 %v460
    %724 = vmatprep.subr.mxu0 %v477
    %725 = vmatpush1.msra.mxu0 %v476
    %726 = vmatprep.subr.mxu0 %v493
    %727 = vmatpush1.msra.mxu0 %v492
    %728 = vmatprep.subr.mxu0 %v509
    %729 = vmatpush1.msra.mxu0 %v508
    %730 = vmatprep.subr.mxu0 %v525
    %731 = vmatpush1.msra.mxu0 %v524
    %732 = vmatprep.subr.mxu0 %v541
    %733 = vmatpush1.msra.mxu0 %v540
    %734 = vmatprep.subr.mxu0 %v557
    %735 = vmatpush1.msra.mxu0 %v556
    %736 = vmatprep.subr.mxu0 %v573
    %737 = vmatpush1.msra.mxu0 %v572
    %738 = vmatprep.mubr.f32.mxu0 %v589
    %739 = vmatmul.mubr.f32.gmra.mrb[0].mxu0 %v588
    %v740 = vpop.f32.mrb[0].mxu0
    %v741 = vadd.f32 %v597, %v740
    %v742 = vpop.f32.mrb[0].mxu0
    %v743 = vadd.f32 %v601, %v742
    %744 = vdwg.mxu0
    %745 = vmatprep.subr.mxu0 %v79
    %746 = vmatpush1.msra.mxu0 %v78
    %747 = vmatprep.subr.mxu0 %v95
    %748 = vmatpush1.msra.mxu0 %v94
    %749 = vmatprep.subr.mxu0 %v111
    %750 = vmatpush1.msra.mxu0 %v110
    %751 = vmatprep.subr.mxu0 %v127
    %752 = vmatpush1.msra.mxu0 %v126
    %753 = vmatprep.subr.mxu0 %v143
    %754 = vmatpush1.msra.mxu0 %v142
    %755 = vmatprep.subr.mxu0 %v159
    %756 = vmatpush1.msra.mxu0 %v158
    %757 = vmatprep.subr.mxu0 %v175
    %758 = vmatpush1.msra.mxu0 %v174
    %759 = vmatprep.subr.mxu0 %v191
    %760 = vmatpush1.msra.mxu0 %v190
    %761 = vmatprep.subr.mxu0 %v207
    %762 = vmatpush1.msra.mxu0 %v206
    %763 = vmatprep.subr.mxu0 %v223
    %764 = vmatpush1.msra.mxu0 %v222
    %765 = vmatprep.subr.mxu0 %v239
    %766 = vmatpush1.msra.mxu0 %v238
    %767 = vmatprep.subr.mxu0 %v255
    %768 = vmatpush1.msra.mxu0 %v254
    %769 = vmatprep.subr.mxu0 %v271
    %770 = vmatpush1.msra.mxu0 %v270
    %771 = vmatprep.subr.mxu0 %v287
    %772 = vmatpush1.msra.mxu0 %v286
    %773 = vmatprep.subr.mxu0 %v303
    %774 = vmatpush1.msra.mxu0 %v302
    %775 = vmatprep.subr.mxu0 %v319
    %776 = vmatpush1.msra.mxu0 %v318
    %777 = vmatprep.subr.mxu0 %v335
    %778 = vmatpush1.msra.mxu0 %v334
    %779 = vmatprep.subr.mxu0 %v351
    %780 = vmatpush1.msra.mxu0 %v350
    %781 = vmatprep.subr.mxu0 %v367
    %782 = vmatpush1.msra.mxu0 %v366
    %783 = vmatprep.subr.mxu0 %v383
    %784 = vmatpush1.msra.mxu0 %v382
    %785 = vmatprep.subr.mxu0 %v399
    %786 = vmatpush1.msra.mxu0 %v398
    %787 = vmatprep.subr.mxu0 %v415
    %788 = vmatpush1.msra.mxu0 %v414
    %789 = vmatprep.subr.mxu0 %v431
    %790 = vmatpush1.msra.mxu0 %v430
    %791 = vmatprep.subr.mxu0 %v447
    %792 = vmatpush1.msra.mxu0 %v446
    %793 = vmatprep.subr.mxu0 %v463
    %794 = vmatpush1.msra.mxu0 %v462
    %795 = vmatprep.subr.mxu0 %v479
    %796 = vmatpush1.msra.mxu0 %v478
    %797 = vmatprep.subr.mxu0 %v495
    %798 = vmatpush1.msra.mxu0 %v494
    %799 = vmatprep.subr.mxu0 %v511
    %800 = vmatpush1.msra.mxu0 %v510
    %801 = vmatprep.subr.mxu0 %v527
    %802 = vmatpush1.msra.mxu0 %v526
    %803 = vmatprep.subr.mxu0 %v543
    %804 = vmatpush1.msra.mxu0 %v542
    %805 = vmatprep.subr.mxu0 %v559
    %806 = vmatpush1.msra.mxu0 %v558
    %807 = vmatprep.subr.mxu0 %v575
    %808 = vmatpush1.msra.mxu0 %v574
    %809 = vmatprep.mubr.f32.mxu0 %v589
    %810 = vmatmul.mubr.f32.gmra.mrb[0].mxu0 %v588
    %v811 = vpop.f32.mrb[0].mxu0
    %v812 = vadd.f32 %v605, %v811
    %v813 = vpop.f32.mrb[0].mxu0
    %v814 = vadd.f32 %v609, %v813
    %815 = vdwg.mxu0
    %816 = vmatprep.subr.mxu0 %v81
    %817 = vmatpush1.msra.mxu0 %v80
    %818 = vmatprep.subr.mxu0 %v97
    %819 = vmatpush1.msra.mxu0 %v96
    %820 = vmatprep.subr.mxu0 %v113
    %821 = vmatpush1.msra.mxu0 %v112
    %822 = vmatprep.subr.mxu0 %v129
    %823 = vmatpush1.msra.mxu0 %v128
    %824 = vmatprep.subr.mxu0 %v145
    %825 = vmatpush1.msra.mxu0 %v144
    %826 = vmatprep.subr.mxu0 %v161
    %827 = vmatpush1.msra.mxu0 %v160
    %828 = vmatprep.subr.mxu0 %v177
    %829 = vmatpush1.msra.mxu0 %v176
    %830 = vmatprep.subr.mxu0 %v193
    %831 = vmatpush1.msra.mxu0 %v192
    %832 = vmatprep.subr.mxu0 %v209
    %833 = vmatpush1.msra.mxu0 %v208
    %834 = vmatprep.subr.mxu0 %v225
    %835 = vmatpush1.msra.mxu0 %v224
    %836 = vmatprep.subr.mxu0 %v241
    %837 = vmatpush1.msra.mxu0 %v240
    %838 = vmatprep.subr.mxu0 %v257
    %839 = vmatpush1.msra.mxu0 %v256
    %840 = vmatprep.subr.mxu0 %v273
    %841 = vmatpush1.msra.mxu0 %v272
    %842 = vmatprep.subr.mxu0 %v289
    %843 = vmatpush1.msra.mxu0 %v288
    %844 = vmatprep.subr.mxu0 %v305
    %845 = vmatpush1.msra.mxu0 %v304
    %846 = vmatprep.subr.mxu0 %v321
    %847 = vmatpush1.msra.mxu0 %v320
    %848 = vmatprep.subr.mxu0 %v337
    %849 = vmatpush1.msra.mxu0 %v336
    %850 = vmatprep.subr.mxu0 %v353
    %851 = vmatpush1.msra.mxu0 %v352
    %852 = vmatprep.subr.mxu0 %v369
    %853 = vmatpush1.msra.mxu0 %v368
    %854 = vmatprep.subr.mxu0 %v385
    %855 = vmatpush1.msra.mxu0 %v384
    %856 = vmatprep.subr.mxu0 %v401
    %857 = vmatpush1.msra.mxu0 %v400
    %858 = vmatprep.subr.mxu0 %v417
    %859 = vmatpush1.msra.mxu0 %v416
    %860 = vmatprep.subr.mxu0 %v433
    %861 = vmatpush1.msra.mxu0 %v432
    %862 = vmatprep.subr.mxu0 %v449
    %863 = vmatpush1.msra.mxu0 %v448
    %864 = vmatprep.subr.mxu0 %v465
    %865 = vmatpush1.msra.mxu0 %v464
    %866 = vmatprep.subr.mxu0 %v481
    %867 = vmatpush1.msra.mxu0 %v480
    %868 = vmatprep.subr.mxu0 %v497
    %869 = vmatpush1.msra.mxu0 %v496
    %870 = vmatprep.subr.mxu0 %v513
    %871 = vmatpush1.msra.mxu0 %v512
    %872 = vmatprep.subr.mxu0 %v529
    %873 = vmatpush1.msra.mxu0 %v528
    %874 = vmatprep.subr.mxu0 %v545
    %875 = vmatpush1.msra.mxu0 %v544
    %876 = vmatprep.subr.mxu0 %v561
    %877 = vmatpush1.msra.mxu0 %v560
    %878 = vmatprep.subr.mxu0 %v577
    %879 = vmatpush1.msra.mxu0 %v576
    %880 = vmatprep.mubr.f32.mxu0 %v589
    %881 = vmatmul.mubr.f32.gmra.mrb[0].mxu0 %v588
    %v882 = vpop.f32.mrb[0].mxu0
    %v883 = vadd.f32 %v613, %v882
    %v884 = vpop.f32.mrb[0].mxu0
    %v885 = vadd.f32 %v617, %v884
    %886 = vdwg.mxu0
    %887 = vmatprep.subr.mxu0 %v83
    %888 = vmatpush1.msra.mxu0 %v82
    %889 = vmatprep.subr.mxu0 %v99
    %890 = vmatpush1.msra.mxu0 %v98
    %891 = vmatprep.subr.mxu0 %v115
    %892 = vmatpush1.msra.mxu0 %v114
    %893 = vmatprep.subr.mxu0 %v131
    %894 = vmatpush1.msra.mxu0 %v130
    %895 = vmatprep.subr.mxu0 %v147
    %896 = vmatpush1.msra.mxu0 %v146
    %897 = vmatprep.subr.mxu0 %v163
    %898 = vmatpush1.msra.mxu0 %v162
    %899 = vmatprep.subr.mxu0 %v179
    %900 = vmatpush1.msra.mxu0 %v178
    %901 = vmatprep.subr.mxu0 %v195
    %902 = vmatpush1.msra.mxu0 %v194
    %903 = vmatprep.subr.mxu0 %v211
    %904 = vmatpush1.msra.mxu0 %v210
    %905 = vmatprep.subr.mxu0 %v227
    %906 = vmatpush1.msra.mxu0 %v226
    %907 = vmatprep.subr.mxu0 %v243
    %908 = vmatpush1.msra.mxu0 %v242
    %909 = vmatprep.subr.mxu0 %v259
    %910 = vmatpush1.msra.mxu0 %v258
    %911 = vmatprep.subr.mxu0 %v275
    %912 = vmatpush1.msra.mxu0 %v274
    %913 = vmatprep.subr.mxu0 %v291
    %914 = vmatpush1.msra.mxu0 %v290
    %915 = vmatprep.subr.mxu0 %v307
    %916 = vmatpush1.msra.mxu0 %v306
    %917 = vmatprep.subr.mxu0 %v323
    %918 = vmatpush1.msra.mxu0 %v322
    %919 = vmatprep.subr.mxu0 %v339
    %920 = vmatpush1.msra.mxu0 %v338
    %921 = vmatprep.subr.mxu0 %v355
    %922 = vmatpush1.msra.mxu0 %v354
    %923 = vmatprep.subr.mxu0 %v371
    %924 = vmatpush1.msra.mxu0 %v370
    %925 = vmatprep.subr.mxu0 %v387
    %926 = vmatpush1.msra.mxu0 %v386
    %927 = vmatprep.subr.mxu0 %v403
    %928 = vmatpush1.msra.mxu0 %v402
    %929 = vmatprep.subr.mxu0 %v419
    %930 = vmatpush1.msra.mxu0 %v418
    %931 = vmatprep.subr.mxu0 %v435
    %932 = vmatpush1.msra.mxu0 %v434
    %933 = vmatprep.subr.mxu0 %v451
    %934 = vmatpush1.msra.mxu0 %v450
    %935 = vmatprep.subr.mxu0 %v467
    %936 = vmatpush1.msra.mxu0 %v466
    %937 = vmatprep.subr.mxu0 %v483
    %938 = vmatpush1.msra.mxu0 %v482
    %939 = vmatprep.subr.mxu0 %v499
    %940 = vmatpush1.msra.mxu0 %v498
    %941 = vmatprep.subr.mxu0 %v515
    %942 = vmatpush1.msra.mxu0 %v514
    %943 = vmatprep.subr.mxu0 %v531
    %944 = vmatpush1.msra.mxu0 %v530
    %945 = vmatprep.subr.mxu0 %v547
    %946 = vmatpush1.msra.mxu0 %v546
    %947 = vmatprep.subr.mxu0 %v563
    %948 = vmatpush1.msra.mxu0 %v562
    %949 = vmatprep.subr.mxu0 %v579
    %950 = vmatpush1.msra.mxu0 %v578
    %951 = vmatprep.mubr.f32.mxu0 %v589
    %952 = vmatmul.mubr.f32.gmra.mrb[0].mxu0 %v588
    %v953 = vpop.f32.mrb[0].mxu0
    %v954 = vadd.f32 %v621, %v953
    %v955 = vpop.f32.mrb[0].mxu0
    %v956 = vadd.f32 %v625, %v955
    %957 = vdwg.mxu0
    %958 = vmatprep.subr.mxu0 %v85
    %959 = vmatpush1.msra.mxu0 %v84
    %960 = vmatprep.subr.mxu0 %v101
    %961 = vmatpush1.msra.mxu0 %v100
    %962 = vmatprep.subr.mxu0 %v117
    %963 = vmatpush1.msra.mxu0 %v116
    %964 = vmatprep.subr.mxu0 %v133
    %965 = vmatpush1.msra.mxu0 %v132
    %966 = vmatprep.subr.mxu0 %v149
    %967 = vmatpush1.msra.mxu0 %v148
    %968 = vmatprep.subr.mxu0 %v165
    %969 = vmatpush1.msra.mxu0 %v164
    %970 = vmatprep.subr.mxu0 %v181
    %971 = vmatpush1.msra.mxu0 %v180
    %972 = vmatprep.subr.mxu0 %v197
    %973 = vmatpush1.msra.mxu0 %v196
    %974 = vmatprep.subr.mxu0 %v213
    %975 = vmatpush1.msra.mxu0 %v212
    %976 = vmatprep.subr.mxu0 %v229
    %977 = vmatpush1.msra.mxu0 %v228
    %978 = vmatprep.subr.mxu0 %v245
    %979 = vmatpush1.msra.mxu0 %v244
    %980 = vmatprep.subr.mxu0 %v261
    %981 = vmatpush1.msra.mxu0 %v260
    %982 = vmatprep.subr.mxu0 %v277
    %983 = vmatpush1.msra.mxu0 %v276
    %984 = vmatprep.subr.mxu0 %v293
    %985 = vmatpush1.msra.mxu0 %v292
    %986 = vmatprep.subr.mxu0 %v309
    %987 = vmatpush1.msra.mxu0 %v308
    %988 = vmatprep.subr.mxu0 %v325
    %989 = vmatpush1.msra.mxu0 %v324
    %990 = vmatprep.subr.mxu0 %v341
    %991 = vmatpush1.msra.mxu0 %v340
    %992 = vmatprep.subr.mxu0 %v357
    %993 = vmatpush1.msra.mxu0 %v356
    %994 = vmatprep.subr.mxu0 %v373
    %995 = vmatpush1.msra.mxu0 %v372
    %996 = vmatprep.subr.mxu0 %v389
    %997 = vmatpush1.msra.mxu0 %v388
    %998 = vmatprep.subr.mxu0 %v405
    %999 = vmatpush1.msra.mxu0 %v404
    %1000 = vmatprep.subr.mxu0 %v421
    %1001 = vmatpush1.msra.mxu0 %v420
    %1002 = vmatprep.subr.mxu0 %v437
    %1003 = vmatpush1.msra.mxu0 %v436
    %1004 = vmatprep.subr.mxu0 %v453
    %1005 = vmatpush1.msra.mxu0 %v452
    %1006 = vmatprep.subr.mxu0 %v469
    %1007 = vmatpush1.msra.mxu0 %v468
    %1008 = vmatprep.subr.mxu0 %v485
    %1009 = vmatpush1.msra.mxu0 %v484
    %1010 = vmatprep.subr.mxu0 %v501
    %1011 = vmatpush1.msra.mxu0 %v500
    %1012 = vmatprep.subr.mxu0 %v517
    %1013 = vmatpush1.msra.mxu0 %v516
    %1014 = vmatprep.subr.mxu0 %v533
    %1015 = vmatpush1.msra.mxu0 %v532
    %1016 = vmatprep.subr.mxu0 %v549
    %1017 = vmatpush1.msra.mxu0 %v548
    %1018 = vmatprep.subr.mxu0 %v565
    %1019 = vmatpush1.msra.mxu0 %v564
    %1020 = vmatprep.subr.mxu0 %v581
    %1021 = vmatpush1.msra.mxu0 %v580
    %1022 = vmatprep.mubr.f32.mxu0 %v589
    %1023 = vmatmul.mubr.f32.gmra.mrb[0].mxu0 %v588
    %v1024 = vpop.f32.mrb[0].mxu0
    %v1025 = vadd.f32 %v629, %v1024
    %v1026 = vpop.f32.mrb[0].mxu0
    %v1027 = vadd.f32 %v633, %v1026
    %1028 = vdwg.mxu0
    %1029 = vmatprep.subr.mxu0 %v87
    %1030 = vmatpush1.msra.mxu0 %v86
    %1031 = vmatprep.subr.mxu0 %v103
    %1032 = vmatpush1.msra.mxu0 %v102
    %1033 = vmatprep.subr.mxu0 %v119
    %1034 = vmatpush1.msra.mxu0 %v118
    %1035 = vmatprep.subr.mxu0 %v135
    %1036 = vmatpush1.msra.mxu0 %v134
    %1037 = vmatprep.subr.mxu0 %v151
    %1038 = vmatpush1.msra.mxu0 %v150
    %1039 = vmatprep.subr.mxu0 %v167
    %1040 = vmatpush1.msra.mxu0 %v166
    %1041 = vmatprep.subr.mxu0 %v183
    %1042 = vmatpush1.msra.mxu0 %v182
    %1043 = vmatprep.subr.mxu0 %v199
    %1044 = vmatpush1.msra.mxu0 %v198
    %1045 = vmatprep.subr.mxu0 %v215
    %1046 = vmatpush1.msra.mxu0 %v214
    %1047 = vmatprep.subr.mxu0 %v231
    %1048 = vmatpush1.msra.mxu0 %v230
    %1049 = vmatprep.subr.mxu0 %v247
    %1050 = vmatpush1.msra.mxu0 %v246
    %1051 = vmatprep.subr.mxu0 %v263
    %1052 = vmatpush1.msra.mxu0 %v262
    %1053 = vmatprep.subr.mxu0 %v279
    %1054 = vmatpush1.msra.mxu0 %v278
    %1055 = vmatprep.subr.mxu0 %v295
    %1056 = vmatpush1.msra.mxu0 %v294
    %1057 = vmatprep.subr.mxu0 %v311
    %1058 = vmatpush1.msra.mxu0 %v310
    %1059 = vmatprep.subr.mxu0 %v327
    %1060 = vmatpush1.msra.mxu0 %v326
    %1061 = vmatprep.subr.mxu0 %v343
    %1062 = vmatpush1.msra.mxu0 %v342
    %1063 = vmatprep.subr.mxu0 %v359
    %1064 = vmatpush1.msra.mxu0 %v358
    %1065 = vmatprep.subr.mxu0 %v375
    %1066 = vmatpush1.msra.mxu0 %v374
    %1067 = vmatprep.subr.mxu0 %v391
    %1068 = vmatpush1.msra.mxu0 %v390
    %1069 = vmatprep.subr.mxu0 %v407
    %1070 = vmatpush1.msra.mxu0 %v406
    %1071 = vmatprep.subr.mxu0 %v423
    %1072 = vmatpush1.msra.mxu0 %v422
    %1073 = vmatprep.subr.mxu0 %v439
    %1074 = vmatpush1.msra.mxu0 %v438
    %1075 = vmatprep.subr.mxu0 %v455
    %1076 = vmatpush1.msra.mxu0 %v454
    %1077 = vmatprep.subr.mxu0 %v471
    %1078 = vmatpush1.msra.mxu0 %v470
    %1079 = vmatprep.subr.mxu0 %v487
    %1080 = vmatpush1.msra.mxu0 %v486
    %1081 = vmatprep.subr.mxu0 %v503
    %1082 = vmatpush1.msra.mxu0 %v502
    %1083 = vmatprep.subr.mxu0 %v519
    %1084 = vmatpush1.msra.mxu0 %v518
    %1085 = vmatprep.subr.mxu0 %v535
    %1086 = vmatpush1.msra.mxu0 %v534
    %1087 = vmatprep.subr.mxu0 %v551
    %1088 = vmatpush1.msra.mxu0 %v550
    %1089 = vmatprep.subr.mxu0 %v567
    %1090 = vmatpush1.msra.mxu0 %v566
    %1091 = vmatprep.subr.mxu0 %v583
    %1092 = vmatpush1.msra.mxu0 %v582
    %1093 = vmatprep.mubr.f32.mxu0 %v589
    %1094 = vmatmul.mubr.f32.gmra.mrb[0].mxu0 %v588
    %v1095 = vpop.f32.mrb[0].mxu0
    %v1096 = vadd.f32 %v637, %v1095
    %v1097 = vpop.f32.mrb[0].mxu0
    %v1098 = vadd.f32 %v641, %v1097
    %1099 = vdwg.mxu0
    %1100 = vmatprep.subr.mxu0 %v89
    %1101 = vmatpush1.msra.mxu0 %v88
    %1102 = vmatprep.subr.mxu0 %v105
    %1103 = vmatpush1.msra.mxu0 %v104
    %1104 = vmatprep.subr.mxu0 %v121
    %1105 = vmatpush1.msra.mxu0 %v120
    %1106 = vmatprep.subr.mxu0 %v137
    %1107 = vmatpush1.msra.mxu0 %v136
    %1108 = vmatprep.subr.mxu0 %v153
    %1109 = vmatpush1.msra.mxu0 %v152
    %1110 = vmatprep.subr.mxu0 %v169
    %1111 = vmatpush1.msra.mxu0 %v168
    %1112 = vmatprep.subr.mxu0 %v185
    %1113 = vmatpush1.msra.mxu0 %v184
    %1114 = vmatprep.subr.mxu0 %v201
    %1115 = vmatpush1.msra.mxu0 %v200
    %1116 = vmatprep.subr.mxu0 %v217
    %1117 = vmatpush1.msra.mxu0 %v216
    %1118 = vmatprep.subr.mxu0 %v233
    %1119 = vmatpush1.msra.mxu0 %v232
    %1120 = vmatprep.subr.mxu0 %v249
    %1121 = vmatpush1.msra.mxu0 %v248
    %1122 = vmatprep.subr.mxu0 %v265
    %1123 = vmatpush1.msra.mxu0 %v264
    %1124 = vmatprep.subr.mxu0 %v281
    %1125 = vmatpush1.msra.mxu0 %v280
    %1126 = vmatprep.subr.mxu0 %v297
    %1127 = vmatpush1.msra.mxu0 %v296
    %1128 = vmatprep.subr.mxu0 %v313
    %1129 = vmatpush1.msra.mxu0 %v312
    %1130 = vmatprep.subr.mxu0 %v329
    %1131 = vmatpush1.msra.mxu0 %v328
    %1132 = vmatprep.subr.mxu0 %v345
    %1133 = vmatpush1.msra.mxu0 %v344
    %1134 = vmatprep.subr.mxu0 %v361
    %1135 = vmatpush1.msra.mxu0 %v360
    %1136 = vmatprep.subr.mxu0 %v377
    %1137 = vmatpush1.msra.mxu0 %v376
    %1138 = vmatprep.subr.mxu0 %v393
    %1139 = vmatpush1.msra.mxu0 %v392
    %1140 = vmatprep.subr.mxu0 %v409
    %1141 = vmatpush1.msra.mxu0 %v408
    %1142 = vmatprep.subr.mxu0 %v425
    %1143 = vmatpush1.msra.mxu0 %v424
    %1144 = vmatprep.subr.mxu0 %v441
    %1145 = vmatpush1.msra.mxu0 %v440
    %1146 = vmatprep.subr.mxu0 %v457
    %1147 = vmatpush1.msra.mxu0 %v456
    %1148 = vmatprep.subr.mxu0 %v473
    %1149 = vmatpush1.msra.mxu0 %v472
    %1150 = vmatprep.subr.mxu0 %v489
    %1151 = vmatpush1.msra.mxu0 %v488
    %1152 = vmatprep.subr.mxu0 %v505
    %1153 = vmatpush1.msra.mxu0 %v504
    %1154 = vmatprep.subr.mxu0 %v521
    %1155 = vmatpush1.msra.mxu0 %v520
    %1156 = vmatprep.subr.mxu0 %v537
    %1157 = vmatpush1.msra.mxu0 %v536
    %1158 = vmatprep.subr.mxu0 %v553
    %1159 = vmatpush1.msra.mxu0 %v552
    %1160 = vmatprep.subr.mxu0 %v569
    %1161 = vmatpush1.msra.mxu0 %v568
    %1162 = vmatprep.subr.mxu0 %v585
    %1163 = vmatpush1.msra.mxu0 %v584
    %1164 = vmatprep.mubr.f32.mxu0 %v589
    %1165 = vmatmul.mubr.f32.gmra.mrb[0].mxu0 %v588
    %v1166 = vpop.f32.mrb[0].mxu0
    %v1167 = vadd.f32 %v645, %v1166
    %v1168 = vpop.f32.mrb[0].mxu0
    %v1169 = vadd.f32 %v649, %v1168
    %1170 = vdwg.mxu0
    %1171 = vmatprep.subr.mxu0 %v91
    %1172 = vmatpush1.msra.mxu0 %v90
    %1173 = vmatprep.subr.mxu0 %v107
    %1174 = vmatpush1.msra.mxu0 %v106
    %1175 = vmatprep.subr.mxu0 %v123
    %1176 = vmatpush1.msra.mxu0 %v122
    %1177 = vmatprep.subr.mxu0 %v139
    %1178 = vmatpush1.msra.mxu0 %v138
    %1179 = vmatprep.subr.mxu0 %v155
    %1180 = vmatpush1.msra.mxu0 %v154
    %1181 = vmatprep.subr.mxu0 %v171
    %1182 = vmatpush1.msra.mxu0 %v170
    %1183 = vmatprep.subr.mxu0 %v187
    %1184 = vmatpush1.msra.mxu0 %v186
    %1185 = vmatprep.subr.mxu0 %v203
    %1186 = vmatpush1.msra.mxu0 %v202
    %1187 = vmatprep.subr.mxu0 %v219
    %1188 = vmatpush1.msra.mxu0 %v218
    %1189 = vmatprep.subr.mxu0 %v235
    %1190 = vmatpush1.msra.mxu0 %v234
    %1191 = vmatprep.subr.mxu0 %v251
    %1192 = vmatpush1.msra.mxu0 %v250
    %1193 = vmatprep.subr.mxu0 %v267
    %1194 = vmatpush1.msra.mxu0 %v266
    %1195 = vmatprep.subr.mxu0 %v283
    %1196 = vmatpush1.msra.mxu0 %v282
    %1197 = vmatprep.subr.mxu0 %v299
    %1198 = vmatpush1.msra.mxu0 %v298
    %1199 = vmatprep.subr.mxu0 %v315
    %1200 = vmatpush1.msra.mxu0 %v314
    %1201 = vmatprep.subr.mxu0 %v331
    %1202 = vmatpush1.msra.mxu0 %v330
    %1203 = vmatprep.subr.mxu0 %v347
    %1204 = vmatpush1.msra.mxu0 %v346
    %1205 = vmatprep.subr.mxu0 %v363
    %1206 = vmatpush1.msra.mxu0 %v362
    %1207 = vmatprep.subr.mxu0 %v379
    %1208 = vmatpush1.msra.mxu0 %v378
    %1209 = vmatprep.subr.mxu0 %v395
    %1210 = vmatpush1.msra.mxu0 %v394
    %1211 = vmatprep.subr.mxu0 %v411
    %1212 = vmatpush1.msra.mxu0 %v410
    %1213 = vmatprep.subr.mxu0 %v427
    %1214 = vmatpush1.msra.mxu0 %v426
    %1215 = vmatprep.subr.mxu0 %v443
    %1216 = vmatpush1.msra.mxu0 %v442
    %1217 = vmatprep.subr.mxu0 %v459
    %1218 = vmatpush1.msra.mxu0 %v458
    %1219 = vmatprep.subr.mxu0 %v475
    %1220 = vmatpush1.msra.mxu0 %v474
    %1221 = vmatprep.subr.mxu0 %v491
    %1222 = vmatpush1.msra.mxu0 %v490
    %1223 = vmatprep.subr.mxu0 %v507
    %1224 = vmatpush1.msra.mxu0 %v506
    %1225 = vmatprep.subr.mxu0 %v523
    %1226 = vmatpush1.msra.mxu0 %v522
    %1227 = vmatprep.subr.mxu0 %v539
    %1228 = vmatpush1.msra.mxu0 %v538
    %1229 = vmatprep.subr.mxu0 %v555
    %1230 = vmatpush1.msra.mxu0 %v554
    %1231 = vmatprep.subr.mxu0 %v571
    %1232 = vmatpush1.msra.mxu0 %v570
    %1233 = vmatprep.subr.mxu0 %v587
    %1234 = vmatpush1.msra.mxu0 %v586
    %1235 = vmatprep.mubr.f32.mxu0 %v589
    %1236 = vmatmul.mubr.f32.gmra.mrb[0].mxu0 %v588
    %v1237 = vpop.f32.mrb[0].mxu0
    %v1238 = vadd.f32 %v653, %v1237
    %v1239 = vpop.f32.mrb[0].mxu0
    %v1240 = vadd.f32 %v657, %v1239
    %1241 = vdwg.mxu0
    %v1242 = vmax.f32 %v741, 0.0
    %v1243 = vmax.f32 %v743, 0.0
    %v1244 = vmax.f32 %v812, 0.0
    %v1245 = vmax.f32 %v814, 0.0
    %v1246 = vmax.f32 %v883, 0.0
    %v1247 = vmax.f32 %v885, 0.0
    %v1248 = vmax.f32 %v954, 0.0
    %v1249 = vmax.f32 %v956, 0.0
    %v1250 = vmax.f32 %v1025, 0.0
    %v1251 = vmax.f32 %v1027, 0.0
    %v1252 = vmax.f32 %v1096, 0.0
    %v1253 = vmax.f32 %v1098, 0.0
    %v1254 = vmax.f32 %v1167, 0.0
    %v1255 = vmax.f32 %v1169, 0.0
    %v1256 = vmax.f32 %v1238, 0.0
    %v1257 = vmax.f32 %v1240, 0.0
    %1258 = vst [vmem:[#allocation12] sm:$0xff] %v1242
    %1259 = vst [vmem:[#allocation12 + $0x8] sm:$0xff] %v1243
    %1260 = vst [vmem:[#allocation12 + $0x10] sm:$0xff] %v1244
    %1261 = vst [vmem:[#allocation12 + $0x18] sm:$0xff] %v1245
    %1262 = vst [vmem:[#allocation12 + $0x20] sm:$0xff] %v1246
    %1263 = vst [vmem:[#allocation12 + $0x28] sm:$0xff] %v1247
    %1264 = vst [vmem:[#allocation12 + $0x30] sm:$0xff] %v1248
    %1265 = vst [vmem:[#allocation12 + $0x38] sm:$0xff] %v1249
    %1266 = vst [vmem:[#allocation12 + $0x40] sm:$0xff] %v1250
    %1267 = vst [vmem:[#allocation12 + $0x48] sm:$0xff] %v1251
    %1268 = vst [vmem:[#allocation12 + $0x50] sm:$0xff] %v1252
    %1269 = vst [vmem:[#allocation12 + $0x58] sm:$0xff] %v1253
    %1270 = vst [vmem:[#allocation12 + $0x60] sm:$0xff] %v1254
    %1271 = vst [vmem:[#allocation12 + $0x68] sm:$0xff] %v1255
    %1272 = vst [vmem:[#allocation12 + $0x70] sm:$0xff] %v1256
    %1273 = vst [vmem:[#allocation12 + $0x78] sm:$0xff] %v1257
    %v1274 = vld [vmem:[#allocation2] sm:$0xff]
    %v1275 = vld [vmem:[#allocation2 + $0x8] sm:$0xff]
    %1276 = vmatprep.subr.mxu0 %v77
    %1277 = vmatpush1.xpose.msra.mxu0 %v76
    %1278 = vmatprep.subr.mxu0 %v93
    %1279 = vmatpush1.xpose.msra.mxu0 %v92
    %1280 = vmatprep.subr.mxu0 %v109
    %1281 = vmatpush1.xpose.msra.mxu0 %v108
    %1282 = vmatprep.subr.mxu0 %v125
    %1283 = vmatpush1.xpose.msra.mxu0 %v124
    %1284 = vmatprep.subr.mxu0 %v141
    %1285 = vmatpush1.xpose.msra.mxu0 %v140
    %1286 = vmatprep.subr.mxu0 %v157
    %1287 = vmatpush1.xpose.msra.mxu0 %v156
    %1288 = vmatprep.subr.mxu0 %v173
    %1289 = vmatpush1.xpose.msra.mxu0 %v172
    %1290 = vmatprep.subr.mxu0 %v189
    %1291 = vmatpush1.xpose.msra.mxu0 %v188
    %1292 = vmatprep.subr.mxu0 %v205
    %1293 = vmatpush1.xpose.msra.mxu0 %v204
    %1294 = vmatprep.subr.mxu0 %v221
    %1295 = vmatpush1.xpose.msra.mxu0 %v220
    %1296 = vmatprep.subr.mxu0 %v237
    %1297 = vmatpush1.xpose.msra.mxu0 %v236
    %1298 = vmatprep.subr.mxu0 %v253
    %1299 = vmatpush1.xpose.msra.mxu0 %v252
    %1300 = vmatprep.subr.mxu0 %v269
    %1301 = vmatpush1.xpose.msra.mxu0 %v268
    %1302 = vmatprep.subr.mxu0 %v285
    %1303 = vmatpush1.xpose.msra.mxu0 %v284
    %1304 = vmatprep.subr.mxu0 %v301
    %1305 = vmatpush1.xpose.msra.mxu0 %v300
    %1306 = vmatprep.subr.mxu0 %v317
    %1307 = vmatpush1.xpose.msra.mxu0 %v316
    %1308 = vmatprep.subr.mxu0 %v333
    %1309 = vmatpush1.xpose.msra.mxu0 %v332
    %1310 = vmatprep.subr.mxu0 %v349
    %1311 = vmatpush1.xpose.msra.mxu0 %v348
    %1312 = vmatprep.subr.mxu0 %v365
    %1313 = vmatpush1.xpose.msra.mxu0 %v364
    %1314 = vmatprep.subr.mxu0 %v381
    %1315 = vmatpush1.xpose.msra.mxu0 %v380
    %1316 = vmatprep.subr.mxu0 %v397
    %1317 = vmatpush1.xpose.msra.mxu0 %v396
    %1318 = vmatprep.subr.mxu0 %v413
    %1319 = vmatpush1.xpose.msra.mxu0 %v412
    %1320 = vmatprep.subr.mxu0 %v429
    %1321 = vmatpush1.xpose.msra.mxu0 %v428
    %1322 = vmatprep.subr.mxu0 %v445
    %1323 = vmatpush1.xpose.msra.mxu0 %v444
    %1324 = vmatprep.subr.mxu0 %v461
    %1325 = vmatpush1.xpose.msra.mxu0 %v460
    %1326 = vmatprep.subr.mxu0 %v477
    %1327 = vmatpush1.xpose.msra.mxu0 %v476
    %1328 = vmatprep.subr.mxu0 %v493
    %1329 = vmatpush1.xpose.msra.mxu0 %v492
    %1330 = vmatprep.subr.mxu0 %v509
    %1331 = vmatpush1.xpose.msra.mxu0 %v508
    %1332 = vmatprep.subr.mxu0 %v525
    %1333 = vmatpush1.xpose.msra.mxu0 %v524
    %1334 = vmatprep.subr.mxu0 %v541
    %1335 = vmatpush1.xpose.msra.mxu0 %v540
    %1336 = vmatprep.subr.mxu0 %v557
    %1337 = vmatpush1.xpose.msra.mxu0 %v556
    %1338 = vmatprep.subr.mxu0 %v573
    %1339 = vmatpush1.xpose.msra.mxu0 %v572
    %1340 = vmatprep.mubr.f32.mxu0 %v1243
    %1341 = vmatmul.mubr.f32.gmra.mrb[0].mxu0 %v1242
    %v1342 = vpop.f32.mrb[0].mxu0
    %v1343 = vadd.f32 0.0, %v1342
    %v1344 = vpop.f32.mrb[0].mxu0
    %v1345 = vadd.f32 0.0, %v1344
    %1346 = vdwg.mxu0
    %1347 = vmatprep.subr.mxu0 %v79
    %1348 = vmatpush1.xpose.msra.mxu0 %v78
    %1349 = vmatprep.subr.mxu0 %v95
    %1350 = vmatpush1.xpose.msra.mxu0 %v94
    %1351 = vmatprep.subr.mxu0 %v111
    %1352 = vmatpush1.xpose.msra.mxu0 %v110
    %1353 = vmatprep.subr.mxu0 %v127
    %1354 = vmatpush1.xpose.msra.mxu0 %v126
    %1355 = vmatprep.subr.mxu0 %v143
    %1356 = vmatpush1.xpose.msra.mxu0 %v142
    %1357 = vmatprep.subr.mxu0 %v159
    %1358 = vmatpush1.xpose.msra.mxu0 %v158
    %1359 = vmatprep.subr.mxu0 %v175
    %1360 = vmatpush1.xpose.msra.mxu0 %v174
    %1361 = vmatprep.subr.mxu0 %v191
    %1362 = vmatpush1.xpose.msra.mxu0 %v190
    %1363 = vmatprep.subr.mxu0 %v207
    %1364 = vmatpush1.xpose.msra.mxu0 %v206
    %1365 = vmatprep.subr.mxu0 %v223
    %1366 = vmatpush1.xpose.msra.mxu0 %v222
    %1367 = vmatprep.subr.mxu0 %v239
    %1368 = vmatpush1.xpose.msra.mxu0 %v238
    %1369 = vmatprep.subr.mxu0 %v255
    %1370 = vmatpush1.xpose.msra.mxu0 %v254
    %1371 = vmatprep.subr.mxu0 %v271
    %1372 = vmatpush1.xpose.msra.mxu0 %v270
    %1373 = vmatprep.subr.mxu0 %v287
    %1374 = vmatpush1.xpose.msra.mxu0 %v286
    %1375 = vmatprep.subr.mxu0 %v303
    %1376 = vmatpush1.xpose.msra.mxu0 %v302
    %1377 = vmatprep.subr.mxu0 %v319
    %1378 = vmatpush1.xpose.msra.mxu0 %v318
    %1379 = vmatprep.subr.mxu0 %v335
    %1380 = vmatpush1.xpose.msra.mxu0 %v334
    %1381 = vmatprep.subr.mxu0 %v351
    %1382 = vmatpush1.xpose.msra.mxu0 %v350
    %1383 = vmatprep.subr.mxu0 %v367
    %1384 = vmatpush1.xpose.msra.mxu0 %v366
    %1385 = vmatprep.subr.mxu0 %v383
    %1386 = vmatpush1.xpose.msra.mxu0 %v382
    %1387 = vmatprep.subr.mxu0 %v399
    %1388 = vmatpush1.xpose.msra.mxu0 %v398
    %1389 = vmatprep.subr.mxu0 %v415
    %1390 = vmatpush1.xpose.msra.mxu0 %v414
    %1391 = vmatprep.subr.mxu0 %v431
    %1392 = vmatpush1.xpose.msra.mxu0 %v430
    %1393 = vmatprep.subr.mxu0 %v447
    %1394 = vmatpush1.xpose.msra.mxu0 %v446
    %1395 = vmatprep.subr.mxu0 %v463
    %1396 = vmatpush1.xpose.msra.mxu0 %v462
    %1397 = vmatprep.subr.mxu0 %v479
    %1398 = vmatpush1.xpose.msra.mxu0 %v478
    %1399 = vmatprep.subr.mxu0 %v495
    %1400 = vmatpush1.xpose.msra.mxu0 %v494
    %1401 = vmatprep.subr.mxu0 %v511
    %1402 = vmatpush1.xpose.msra.mxu0 %v510
    %1403 = vmatprep.subr.mxu0 %v527
    %1404 = vmatpush1.xpose.msra.mxu0 %v526
    %1405 = vmatprep.subr.mxu0 %v543
    %1406 = vmatpush1.xpose.msra.mxu0 %v542
    %1407 = vmatprep.subr.mxu0 %v559
    %1408 = vmatpush1.xpose.msra.mxu0 %v558
    %1409 = vmatprep.subr.mxu0 %v575
    %1410 = vmatpush1.xpose.msra.mxu0 %v574
    %1411 = vmatprep.mubr.f32.mxu0 %v1245
    %1412 = vmatmul.mubr.f32.gmra.mrb[0].mxu0 %v1244
    %v1413 = vpop.f32.mrb[0].mxu0
    %v1414 = vadd.f32 %v1343, %v1413
    %v1415 = vpop.f32.mrb[0].mxu0
    %v1416 = vadd.f32 %v1345, %v1415
    %1417 = vdwg.mxu0
    %1418 = vmatprep.subr.mxu0 %v81
    %1419 = vmatpush1.xpose.msra.mxu0 %v80
    %1420 = vmatprep.subr.mxu0 %v97
    %1421 = vmatpush1.xpose.msra.mxu0 %v96
    %1422 = vmatprep.subr.mxu0 %v113
    %1423 = vmatpush1.xpose.msra.mxu0 %v112
    %1424 = vmatprep.subr.mxu0 %v129
    %1425 = vmatpush1.xpose.msra.mxu0 %v128
    %1426 = vmatprep.subr.mxu0 %v145
    %1427 = vmatpush1.xpose.msra.mxu0 %v144
    %1428 = vmatprep.subr.mxu0 %v161
    %1429 = vmatpush1.xpose.msra.mxu0 %v160
    %1430 = vmatprep.subr.mxu0 %v177
    %1431 = vmatpush1.xpose.msra.mxu0 %v176
    %1432 = vmatprep.subr.mxu0 %v193
    %1433 = vmatpush1.xpose.msra.mxu0 %v192
    %1434 = vmatprep.subr.mxu0 %v209
    %1435 = vmatpush1.xpose.msra.mxu0 %v208
    %1436 = vmatprep.subr.mxu0 %v225
    %1437 = vmatpush1.xpose.msra.mxu0 %v224
    %1438 = vmatprep.subr.mxu0 %v241
    %1439 = vmatpush1.xpose.msra.mxu0 %v240
    %1440 = vmatprep.subr.mxu0 %v257
    %1441 = vmatpush1.xpose.msra.mxu0 %v256
    %1442 = vmatprep.subr.mxu0 %v273
    %1443 = vmatpush1.xpose.msra.mxu0 %v272
    %1444 = vmatprep.subr.mxu0 %v289
    %1445 = vmatpush1.xpose.msra.mxu0 %v288
    %1446 = vmatprep.subr.mxu0 %v305
    %1447 = vmatpush1.xpose.msra.mxu0 %v304
    %1448 = vmatprep.subr.mxu0 %v321
    %1449 = vmatpush1.xpose.msra.mxu0 %v320
    %1450 = vmatprep.subr.mxu0 %v337
    %1451 = vmatpush1.xpose.msra.mxu0 %v336
    %1452 = vmatprep.subr.mxu0 %v353
    %1453 = vmatpush1.xpose.msra.mxu0 %v352
    %1454 = vmatprep.subr.mxu0 %v369
    %1455 = vmatpush1.xpose.msra.mxu0 %v368
    %1456 = vmatprep.subr.mxu0 %v385
    %1457 = vmatpush1.xpose.msra.mxu0 %v384
    %1458 = vmatprep.subr.mxu0 %v401
    %1459 = vmatpush1.xpose.msra.mxu0 %v400
    %1460 = vmatprep.subr.mxu0 %v417
    %1461 = vmatpush1.xpose.msra.mxu0 %v416
    %1462 = vmatprep.subr.mxu0 %v433
    %1463 = vmatpush1.xpose.msra.mxu0 %v432
    %1464 = vmatprep.subr.mxu0 %v449
    %1465 = vmatpush1.xpose.msra.mxu0 %v448
    %1466 = vmatprep.subr.mxu0 %v465
    %1467 = vmatpush1.xpose.msra.mxu0 %v464
    %1468 = vmatprep.subr.mxu0 %v481
    %1469 = vmatpush1.xpose.msra.mxu0 %v480
    %1470 = vmatprep.subr.mxu0 %v497
    %1471 = vmatpush1.xpose.msra.mxu0 %v496
    %1472 = vmatprep.subr.mxu0 %v513
    %1473 = vmatpush1.xpose.msra.mxu0 %v512
    %1474 = vmatprep.subr.mxu0 %v529
    %1475 = vmatpush1.xpose.msra.mxu0 %v528
    %1476 = vmatprep.subr.mxu0 %v545
    %1477 = vmatpush1.xpose.msra.mxu0 %v544
    %1478 = vmatprep.subr.mxu0 %v561
    %1479 = vmatpush1.xpose.msra.mxu0 %v560
    %1480 = vmatprep.subr.mxu0 %v577
    %1481 = vmatpush1.xpose.msra.mxu0 %v576
    %1482 = vmatprep.mubr.f32.mxu0 %v1247
    %1483 = vmatmul.mubr.f32.gmra.mrb[0].mxu0 %v1246
    %v1484 = vpop.f32.mrb[0].mxu0
    %v1485 = vadd.f32 %v1414, %v1484
    %v1486 = vpop.f32.mrb[0].mxu0
    %v1487 = vadd.f32 %v1416, %v1486
    %1488 = vdwg.mxu0
    %1489 = vmatprep.subr.mxu0 %v83
    %1490 = vmatpush1.xpose.msra.mxu0 %v82
    %1491 = vmatprep.subr.mxu0 %v99
    %1492 = vmatpush1.xpose.msra.mxu0 %v98
    %1493 = vmatprep.subr.mxu0 %v115
    %1494 = vmatpush1.xpose.msra.mxu0 %v114
    %1495 = vmatprep.subr.mxu0 %v131
    %1496 = vmatpush1.xpose.msra.mxu0 %v130
    %1497 = vmatprep.subr.mxu0 %v147
    %1498 = vmatpush1.xpose.msra.mxu0 %v146
    %1499 = vmatprep.subr.mxu0 %v163
    %1500 = vmatpush1.xpose.msra.mxu0 %v162
    %1501 = vmatprep.subr.mxu0 %v179
    %1502 = vmatpush1.xpose.msra.mxu0 %v178
    %1503 = vmatprep.subr.mxu0 %v195
    %1504 = vmatpush1.xpose.msra.mxu0 %v194
    %1505 = vmatprep.subr.mxu0 %v211
    %1506 = vmatpush1.xpose.msra.mxu0 %v210
    %1507 = vmatprep.subr.mxu0 %v227
    %1508 = vmatpush1.xpose.msra.mxu0 %v226
    %1509 = vmatprep.subr.mxu0 %v243
    %1510 = vmatpush1.xpose.msra.mxu0 %v242
    %1511 = vmatprep.subr.mxu0 %v259
    %1512 = vmatpush1.xpose.msra.mxu0 %v258
    %1513 = vmatprep.subr.mxu0 %v275
    %1514 = vmatpush1.xpose.msra.mxu0 %v274
    %1515 = vmatprep.subr.mxu0 %v291
    %1516 = vmatpush1.xpose.msra.mxu0 %v290
    %1517 = vmatprep.subr.mxu0 %v307
    %1518 = vmatpush1.xpose.msra.mxu0 %v306
    %1519 = vmatprep.subr.mxu0 %v323
    %1520 = vmatpush1.xpose.msra.mxu0 %v322
    %1521 = vmatprep.subr.mxu0 %v339
    %1522 = vmatpush1.xpose.msra.mxu0 %v338
    %1523 = vmatprep.subr.mxu0 %v355
    %1524 = vmatpush1.xpose.msra.mxu0 %v354
    %1525 = vmatprep.subr.mxu0 %v371
    %1526 = vmatpush1.xpose.msra.mxu0 %v370
    %1527 = vmatprep.subr.mxu0 %v387
    %1528 = vmatpush1.xpose.msra.mxu0 %v386
    %1529 = vmatprep.subr.mxu0 %v403
    %1530 = vmatpush1.xpose.msra.mxu0 %v402
    %1531 = vmatprep.subr.mxu0 %v419
    %1532 = vmatpush1.xpose.msra.mxu0 %v418
    %1533 = vmatprep.subr.mxu0 %v435
    %1534 = vmatpush1.xpose.msra.mxu0 %v434
    %1535 = vmatprep.subr.mxu0 %v451
    %1536 = vmatpush1.xpose.msra.mxu0 %v450
    %1537 = vmatprep.subr.mxu0 %v467
    %1538 = vmatpush1.xpose.msra.mxu0 %v466
    %1539 = vmatprep.subr.mxu0 %v483
    %1540 = vmatpush1.xpose.msra.mxu0 %v482
    %1541 = vmatprep.subr.mxu0 %v499
    %1542 = vmatpush1.xpose.msra.mxu0 %v498
    %1543 = vmatprep.subr.mxu0 %v515
    %1544 = vmatpush1.xpose.msra.mxu0 %v514
    %1545 = vmatprep.subr.mxu0 %v531
    %1546 = vmatpush1.xpose.msra.mxu0 %v530
    %1547 = vmatprep.subr.mxu0 %v547
    %1548 = vmatpush1.xpose.msra.mxu0 %v546
    %1549 = vmatprep.subr.mxu0 %v563
    %1550 = vmatpush1.xpose.msra.mxu0 %v562
    %1551 = vmatprep.subr.mxu0 %v579
    %1552 = vmatpush1.xpose.msra.mxu0 %v578
    %1553 = vmatprep.mubr.f32.mxu0 %v1249
    %1554 = vmatmul.mubr.f32.gmra.mrb[0].mxu0 %v1248
    %v1555 = vpop.f32.mrb[0].mxu0
    %v1556 = vadd.f32 %v1485, %v1555
    %v1557 = vpop.f32.mrb[0].mxu0
    %v1558 = vadd.f32 %v1487, %v1557
    %1559 = vdwg.mxu0
    %1560 = vmatprep.subr.mxu0 %v85
    %1561 = vmatpush1.xpose.msra.mxu0 %v84
    %1562 = vmatprep.subr.mxu0 %v101
    %1563 = vmatpush1.xpose.msra.mxu0 %v100
    %1564 = vmatprep.subr.mxu0 %v117
    %1565 = vmatpush1.xpose.msra.mxu0 %v116
    %1566 = vmatprep.subr.mxu0 %v133
    %1567 = vmatpush1.xpose.msra.mxu0 %v132
    %1568 = vmatprep.subr.mxu0 %v149
    %1569 = vmatpush1.xpose.msra.mxu0 %v148
    %1570 = vmatprep.subr.mxu0 %v165
    %1571 = vmatpush1.xpose.msra.mxu0 %v164
    %1572 = vmatprep.subr.mxu0 %v181
    %1573 = vmatpush1.xpose.msra.mxu0 %v180
    %1574 = vmatprep.subr.mxu0 %v197
    %1575 = vmatpush1.xpose.msra.mxu0 %v196
    %1576 = vmatprep.subr.mxu0 %v213
    %1577 = vmatpush1.xpose.msra.mxu0 %v212
    %1578 = vmatprep.subr.mxu0 %v229
    %1579 = vmatpush1.xpose.msra.mxu0 %v228
    %1580 = vmatprep.subr.mxu0 %v245
    %1581 = vmatpush1.xpose.msra.mxu0 %v244
    %1582 = vmatprep.subr.mxu0 %v261
    %1583 = vmatpush1.xpose.msra.mxu0 %v260
    %1584 = vmatprep.subr.mxu0 %v277
    %1585 = vmatpush1.xpose.msra.mxu0 %v276
    %1586 = vmatprep.subr.mxu0 %v293
    %1587 = vmatpush1.xpose.msra.mxu0 %v292
    %1588 = vmatprep.subr.mxu0 %v309
    %1589 = vmatpush1.xpose.msra.mxu0 %v308
    %1590 = vmatprep.subr.mxu0 %v325
    %1591 = vmatpush1.xpose.msra.mxu0 %v324
    %1592 = vmatprep.subr.mxu0 %v341
    %1593 = vmatpush1.xpose.msra.mxu0 %v340
    %1594 = vmatprep.subr.mxu0 %v357
    %1595 = vmatpush1.xpose.msra.mxu0 %v356
    %1596 = vmatprep.subr.mxu0 %v373
    %1597 = vmatpush1.xpose.msra.mxu0 %v372
    %1598 = vmatprep.subr.mxu0 %v389
    %1599 = vmatpush1.xpose.msra.mxu0 %v388
    %1600 = vmatprep.subr.mxu0 %v405
    %1601 = vmatpush1.xpose.msra.mxu0 %v404
    %1602 = vmatprep.subr.mxu0 %v421
    %1603 = vmatpush1.xpose.msra.mxu0 %v420
    %1604 = vmatprep.subr.mxu0 %v437
    %1605 = vmatpush1.xpose.msra.mxu0 %v436
    %1606 = vmatprep.subr.mxu0 %v453
    %1607 = vmatpush1.xpose.msra.mxu0 %v452
    %1608 = vmatprep.subr.mxu0 %v469
    %1609 = vmatpush1.xpose.msra.mxu0 %v468
    %1610 = vmatprep.subr.mxu0 %v485
    %1611 = vmatpush1.xpose.msra.mxu0 %v484
    %1612 = vmatprep.subr.mxu0 %v501
    %1613 = vmatpush1.xpose.msra.mxu0 %v500
    %1614 = vmatprep.subr.mxu0 %v517
    %1615 = vmatpush1.xpose.msra.mxu0 %v516
    %1616 = vmatprep.subr.mxu0 %v533
    %1617 = vmatpush1.xpose.msra.mxu0 %v532
    %1618 = vmatprep.subr.mxu0 %v549
    %1619 = vmatpush1.xpose.msra.mxu0 %v548
    %1620 = vmatprep.subr.mxu0 %v565
    %1621 = vmatpush1.xpose.msra.mxu0 %v564
    %1622 = vmatprep.subr.mxu0 %v581
    %1623 = vmatpush1.xpose.msra.mxu0 %v580
    %1624 = vmatprep.mubr.f32.mxu0 %v1251
    %1625 = vmatmul.mubr.f32.gmra.mrb[0].mxu0 %v1250
    %v1626 = vpop.f32.mrb[0].mxu0
    %v1627 = vadd.f32 %v1556, %v1626
    %v1628 = vpop.f32.mrb[0].mxu0
    %v1629 = vadd.f32 %v1558, %v1628
    %1630 = vdwg.mxu0
    %1631 = vmatprep.subr.mxu0 %v87
    %1632 = vmatpush1.xpose.msra.mxu0 %v86
    %1633 = vmatprep.subr.mxu0 %v103
    %1634 = vmatpush1.xpose.msra.mxu0 %v102
    %1635 = vmatprep.subr.mxu0 %v119
    %1636 = vmatpush1.xpose.msra.mxu0 %v118
    %1637 = vmatprep.subr.mxu0 %v135
    %1638 = vmatpush1.xpose.msra.mxu0 %v134
    %1639 = vmatprep.subr.mxu0 %v151
    %1640 = vmatpush1.xpose.msra.mxu0 %v150
    %1641 = vmatprep.subr.mxu0 %v167
    %1642 = vmatpush1.xpose.msra.mxu0 %v166
    %1643 = vmatprep.subr.mxu0 %v183
    %1644 = vmatpush1.xpose.msra.mxu0 %v182
    %1645 = vmatprep.subr.mxu0 %v199
    %1646 = vmatpush1.xpose.msra.mxu0 %v198
    %1647 = vmatprep.subr.mxu0 %v215
    %1648 = vmatpush1.xpose.msra.mxu0 %v214
    %1649 = vmatprep.subr.mxu0 %v231
    %1650 = vmatpush1.xpose.msra.mxu0 %v230
    %1651 = vmatprep.subr.mxu0 %v247
    %1652 = vmatpush1.xpose.msra.mxu0 %v246
    %1653 = vmatprep.subr.mxu0 %v263
    %1654 = vmatpush1.xpose.msra.mxu0 %v262
    %1655 = vmatprep.subr.mxu0 %v279
    %1656 = vmatpush1.xpose.msra.mxu0 %v278
    %1657 = vmatprep.subr.mxu0 %v295
    %1658 = vmatpush1.xpose.msra.mxu0 %v294
    %1659 = vmatprep.subr.mxu0 %v311
    %1660 = vmatpush1.xpose.msra.mxu0 %v310
    %1661 = vmatprep.subr.mxu0 %v327
    %1662 = vmatpush1.xpose.msra.mxu0 %v326
    %1663 = vmatprep.subr.mxu0 %v343
    %1664 = vmatpush1.xpose.msra.mxu0 %v342
    %1665 = vmatprep.subr.mxu0 %v359
    %1666 = vmatpush1.xpose.msra.mxu0 %v358
    %1667 = vmatprep.subr.mxu0 %v375
    %1668 = vmatpush1.xpose.msra.mxu0 %v374
    %1669 = vmatprep.subr.mxu0 %v391
    %1670 = vmatpush1.xpose.msra.mxu0 %v390
    %1671 = vmatprep.subr.mxu0 %v407
    %1672 = vmatpush1.xpose.msra.mxu0 %v406
    %1673 = vmatprep.subr.mxu0 %v423
    %1674 = vmatpush1.xpose.msra.mxu0 %v422
    %1675 = vmatprep.subr.mxu0 %v439
    %1676 = vmatpush1.xpose.msra.mxu0 %v438
    %1677 = vmatprep.subr.mxu0 %v455
    %1678 = vmatpush1.xpose.msra.mxu0 %v454
    %1679 = vmatprep.subr.mxu0 %v471
    %1680 = vmatpush1.xpose.msra.mxu0 %v470
    %1681 = vmatprep.subr.mxu0 %v487
    %1682 = vmatpush1.xpose.msra.mxu0 %v486
    %1683 = vmatprep.subr.mxu0 %v503
    %1684 = vmatpush1.xpose.msra.mxu0 %v502
    %1685 = vmatprep.subr.mxu0 %v519
    %1686 = vmatpush1.xpose.msra.mxu0 %v518
    %1687 = vmatprep.subr.mxu0 %v535
    %1688 = vmatpush1.xpose.msra.mxu0 %v534
    %1689 = vmatprep.subr.mxu0 %v551
    %1690 = vmatpush1.xpose.msra.mxu0 %v550
    %1691 = vmatprep.subr.mxu0 %v567
    %1692 = vmatpush1.xpose.msra.mxu0 %v566
    %1693 = vmatprep.subr.mxu0 %v583
    %1694 = vmatpush1.xpose.msra.mxu0 %v582
    %1695 = vmatprep.mubr.f32.mxu0 %v1253
    %1696 = vmatmul.mubr.f32.gmra.mrb[0].mxu0 %v1252
    %v1697 = vpop.f32.mrb[0].mxu0
    %v1698 = vadd.f32 %v1627, %v1697
    %v1699 = vpop.f32.mrb[0].mxu0
    %v1700 = vadd.f32 %v1629, %v1699
    %1701 = vdwg.mxu0
    %1702 = vmatprep.subr.mxu0 %v89
    %1703 = vmatpush1.xpose.msra.mxu0 %v88
    %1704 = vmatprep.subr.mxu0 %v105
    %1705 = vmatpush1.xpose.msra.mxu0 %v104
    %1706 = vmatprep.subr.mxu0 %v121
    %1707 = vmatpush1.xpose.msra.mxu0 %v120
    %1708 = vmatprep.subr.mxu0 %v137
    %1709 = vmatpush1.xpose.msra.mxu0 %v136
    %1710 = vmatprep.subr.mxu0 %v153
    %1711 = vmatpush1.xpose.msra.mxu0 %v152
    %1712 = vmatprep.subr.mxu0 %v169
    %1713 = vmatpush1.xpose.msra.mxu0 %v168
    %1714 = vmatprep.subr.mxu0 %v185
    %1715 = vmatpush1.xpose.msra.mxu0 %v184
    %1716 = vmatprep.subr.mxu0 %v201
    %1717 = vmatpush1.xpose.msra.mxu0 %v200
    %1718 = vmatprep.subr.mxu0 %v217
    %1719 = vmatpush1.xpose.msra.mxu0 %v216
    %1720 = vmatprep.subr.mxu0 %v233
    %1721 = vmatpush1.xpose.msra.mxu0 %v232
    %1722 = vmatprep.subr.mxu0 %v249
    %1723 = vmatpush1.xpose.msra.mxu0 %v248
    %1724 = vmatprep.subr.mxu0 %v265
    %1725 = vmatpush1.xpose.msra.mxu0 %v264
    %1726 = vmatprep.subr.mxu0 %v281
    %1727 = vmatpush1.xpose.msra.mxu0 %v280
    %1728 = vmatprep.subr.mxu0 %v297
    %1729 = vmatpush1.xpose.msra.mxu0 %v296
    %1730 = vmatprep.subr.mxu0 %v313
    %1731 = vmatpush1.xpose.msra.mxu0 %v312
    %1732 = vmatprep.subr.mxu0 %v329
    %1733 = vmatpush1.xpose.msra.mxu0 %v328
    %1734 = vmatprep.subr.mxu0 %v345
    %1735 = vmatpush1.xpose.msra.mxu0 %v344
    %1736 = vmatprep.subr.mxu0 %v361
    %1737 = vmatpush1.xpose.msra.mxu0 %v360
    %1738 = vmatprep.subr.mxu0 %v377
    %1739 = vmatpush1.xpose.msra.mxu0 %v376
    %1740 = vmatprep.subr.mxu0 %v393
    %1741 = vmatpush1.xpose.msra.mxu0 %v392
    %1742 = vmatprep.subr.mxu0 %v409
    %1743 = vmatpush1.xpose.msra.mxu0 %v408
    %1744 = vmatprep.subr.mxu0 %v425
    %1745 = vmatpush1.xpose.msra.mxu0 %v424
    %1746 = vmatprep.subr.mxu0 %v441
    %1747 = vmatpush1.xpose.msra.mxu0 %v440
    %1748 = vmatprep.subr.mxu0 %v457
    %1749 = vmatpush1.xpose.msra.mxu0 %v456
    %1750 = vmatprep.subr.mxu0 %v473
    %1751 = vmatpush1.xpose.msra.mxu0 %v472
    %1752 = vmatprep.subr.mxu0 %v489
    %1753 = vmatpush1.xpose.msra.mxu0 %v488
    %1754 = vmatprep.subr.mxu0 %v505
    %1755 = vmatpush1.xpose.msra.mxu0 %v504
    %1756 = vmatprep.subr.mxu0 %v521
    %1757 = vmatpush1.xpose.msra.mxu0 %v520
    %1758 = vmatprep.subr.mxu0 %v537
    %1759 = vmatpush1.xpose.msra.mxu0 %v536
    %1760 = vmatprep.subr.mxu0 %v553
    %1761 = vmatpush1.xpose.msra.mxu0 %v552
    %1762 = vmatprep.subr.mxu0 %v569
    %1763 = vmatpush1.xpose.msra.mxu0 %v568
    %1764 = vmatprep.subr.mxu0 %v585
    %1765 = vmatpush1.xpose.msra.mxu0 %v584
    %1766 = vmatprep.mubr.f32.mxu0 %v1255
    %1767 = vmatmul.mubr.f32.gmra.mrb[0].mxu0 %v1254
    %v1768 = vpop.f32.mrb[0].mxu0
    %v1769 = vadd.f32 %v1698, %v1768
    %v1770 = vpop.f32.mrb[0].mxu0
    %v1771 = vadd.f32 %v1700, %v1770
    %1772 = vdwg.mxu0
    %1773 = vmatprep.subr.mxu0 %v91
    %1774 = vmatpush1.xpose.msra.mxu0 %v90
    %1775 = vmatprep.subr.mxu0 %v107
    %1776 = vmatpush1.xpose.msra.mxu0 %v106
    %1777 = vmatprep.subr.mxu0 %v123
    %1778 = vmatpush1.xpose.msra.mxu0 %v122
    %1779 = vmatprep.subr.mxu0 %v139
    %1780 = vmatpush1.xpose.msra.mxu0 %v138
    %1781 = vmatprep.subr.mxu0 %v155
    %1782 = vmatpush1.xpose.msra.mxu0 %v154
    %1783 = vmatprep.subr.mxu0 %v171
    %1784 = vmatpush1.xpose.msra.mxu0 %v170
    %1785 = vmatprep.subr.mxu0 %v187
    %1786 = vmatpush1.xpose.msra.mxu0 %v186
    %1787 = vmatprep.subr.mxu0 %v203
    %1788 = vmatpush1.xpose.msra.mxu0 %v202
    %1789 = vmatprep.subr.mxu0 %v219
    %1790 = vmatpush1.xpose.msra.mxu0 %v218
    %1791 = vmatprep.subr.mxu0 %v235
    %1792 = vmatpush1.xpose.msra.mxu0 %v234
    %1793 = vmatprep.subr.mxu0 %v251
    %1794 = vmatpush1.xpose.msra.mxu0 %v250
    %1795 = vmatprep.subr.mxu0 %v267
    %1796 = vmatpush1.xpose.msra.mxu0 %v266
    %1797 = vmatprep.subr.mxu0 %v283
    %1798 = vmatpush1.xpose.msra.mxu0 %v282
    %1799 = vmatprep.subr.mxu0 %v299
    %1800 = vmatpush1.xpose.msra.mxu0 %v298
    %1801 = vmatprep.subr.mxu0 %v315
    %1802 = vmatpush1.xpose.msra.mxu0 %v314
    %1803 = vmatprep.subr.mxu0 %v331
    %1804 = vmatpush1.xpose.msra.mxu0 %v330
    %1805 = vmatprep.subr.mxu0 %v347
    %1806 = vmatpush1.xpose.msra.mxu0 %v346
    %1807 = vmatprep.subr.mxu0 %v363
    %1808 = vmatpush1.xpose.msra.mxu0 %v362
    %1809 = vmatprep.subr.mxu0 %v379
    %1810 = vmatpush1.xpose.msra.mxu0 %v378
    %1811 = vmatprep.subr.mxu0 %v395
    %1812 = vmatpush1.xpose.msra.mxu0 %v394
    %1813 = vmatprep.subr.mxu0 %v411
    %1814 = vmatpush1.xpose.msra.mxu0 %v410
    %1815 = vmatprep.subr.mxu0 %v427
    %1816 = vmatpush1.xpose.msra.mxu0 %v426
    %1817 = vmatprep.subr.mxu0 %v443
    %1818 = vmatpush1.xpose.msra.mxu0 %v442
    %1819 = vmatprep.subr.mxu0 %v459
    %1820 = vmatpush1.xpose.msra.mxu0 %v458
    %1821 = vmatprep.subr.mxu0 %v475
    %1822 = vmatpush1.xpose.msra.mxu0 %v474
    %1823 = vmatprep.subr.mxu0 %v491
    %1824 = vmatpush1.xpose.msra.mxu0 %v490
    %1825 = vmatprep.subr.mxu0 %v507
    %1826 = vmatpush1.xpose.msra.mxu0 %v506
    %1827 = vmatprep.subr.mxu0 %v523
    %1828 = vmatpush1.xpose.msra.mxu0 %v522
    %1829 = vmatprep.subr.mxu0 %v539
    %1830 = vmatpush1.xpose.msra.mxu0 %v538
    %1831 = vmatprep.subr.mxu0 %v555
    %1832 = vmatpush1.xpose.msra.mxu0 %v554
    %1833 = vmatprep.subr.mxu0 %v571
    %1834 = vmatpush1.xpose.msra.mxu0 %v570
    %1835 = vmatprep.subr.mxu0 %v587
    %1836 = vmatpush1.xpose.msra.mxu0 %v586
    %1837 = vmatprep.mubr.f32.mxu0 %v1257
    %1838 = vmatmul.mubr.f32.gmra.mrb[0].mxu0 %v1256
    %v1839 = vpop.f32.mrb[0].mxu0
    %v1840 = vadd.f32 %v1769, %v1839
    %v1841 = vpop.f32.mrb[0].mxu0
    %v1842 = vadd.f32 %v1771, %v1841
    %1843 = vdwg.mxu0
    %v1844 = vadd.f32 %v1274, %v1840
    %v1845 = vadd.f32 %v1275, %v1842
    %1846 = vst [vmem:[#allocation2] sm:$0xff] %v1844
    %1847 = vst [vmem:[#allocation2 + $0x8] sm:$0xff] %v1845
    // Predicated region
    $region38: #{tpu_custom_call.1} parent=1 // pred_check
      %p1848 = pneg %p70
    $region39: #{tpu_custom_call.1} parent=1 // pred_check_branch
      %1850 = sbr.rel (%p1848) target = $region41
    $region40: #{tpu_custom_call.1} parent=1 // pred_region
      %v1851 = vld [vmem:[#allocation2] sm:$0xff]
      %v1852 = vld [vmem:[#allocation2 + $0x8] sm:$0xff]
      %v1853 = vld [vmem:[#allocation9] sm:$0x3]
      %v1855 = vlaneseq
      %v1856 = vshrl.u32 %v1855, 7
      %v1857 = vsub.s32 0, %v1856
      %v1858 = vrot.slane %v1853, %v1857
      %v1859 = vlaneseq
      %v1860 = vshrl.u32 %v1859, 7
      %v1861 = vsub.s32 1, %v1860
      %v1862 = vrot.slane %v1853, %v1861
      %v1865 = vadd.f32 %v1851, %v1858
      %v1866 = vadd.f32 %v1852, %v1862
      %1867 = vst [vmem:[#allocation11] sm:$0xff] %v1865
      %1868 = vst [vmem:[#allocation11 + $0x8] sm:$0xff] %v1866
    $region41: #{tpu_custom_call.1} parent=1 // pred_fallthru
      _
    // Predicated region
    $region42: #{tpu_custom_call.1} parent=1 // pred_check
      _
    $region43: #{tpu_custom_call.1} parent=1 // pred_check_branch
      %1870 = sbr.rel (0) target = $region45
    $region44: #{tpu_custom_call.1} parent=1 // pred_region
      %s1872 = ssub.s32 256, 256
      %1873 = vsyncadd [#allocation5], %s1872
      %s1875 = sshll.u32 [#allocation11], 4
      %s1876 = int_to_ptr.vmem [resolvable:$true] %s1875
      %1878 = dma.vmem_to_hbm [thread:$0]  %s1876, 256, %s4, [#allocation5]
    $region45: #{tpu_custom_call.1} parent=1 // pred_fallthru
      _
    // Predicated region
    $region46: #{tpu_custom_call.1} parent=1 // pred_check
      _
    $region47: #{tpu_custom_call.1} parent=1 // pred_check_branch
      %1880 = sbr.rel (0) target = $region49
    $region48: #{tpu_custom_call.1} parent=1 // pred_region
      %s1882 = ssub.s32 2048, 2048
      %1883 = vsyncadd [#allocation13], %s1882
      %s1885 = sshll.u32 [#allocation12], 4
      %s1886 = int_to_ptr.vmem [resolvable:$true] %s1885
      %1888 = dma.vmem_to_hbm [thread:$0]  %s1886, 2048, %s5, [#allocation13]
    $region49: #{tpu_custom_call.1} parent=1 // pred_fallthru
      _
    // Predicated region
    $region50: #{tpu_custom_call.1} parent=1 // pred_check
      _
    $region51: #{tpu_custom_call.1} parent=1 // pred_check_branch
      %1890 = sbr.rel (0) target = $region53
    $region52: #{tpu_custom_call.1} parent=1 // pred_region
      %1891 = dma.done [#allocation5], 256
    $region53: #{tpu_custom_call.1} parent=1 // pred_fallthru
      _
    // Predicated region
    $region54: #{tpu_custom_call.1} parent=1 // pred_check
      _
    $region55: #{tpu_custom_call.1} parent=1 // pred_check_branch
      %1893 = sbr.rel (0) target = $region57
    $region56: #{tpu_custom_call.1} parent=1 // pred_region
      %1894 = dma.done [#allocation13], 2048
    $region57: #{tpu_custom_call.1} parent=1 // pred_fallthru
      _
    %1895 = vsyncpa [#allocation4], 1
    %1896 = vsyncpa [#allocation7], 1
    %1897 = vsyncpa [#allocation10], 1
    %1898 = vsyncpa [#allocation5], 1
    %1899 = vsyncpa [#allocation13], 1

</llo_original>
